<compile_context>
chip_gen: v6e
topology: v6e:2x2x1
jax: 0.10.0
libtpu: 0.0.40
codegen_flags: <defaults>
</compile_context>

<pallas_src>
import numpy as np

import jax
import jax.numpy as jnp
from jax import lax
from jax.experimental import pallas as pl
from jax.experimental.pallas import tpu as pltpu


_NEG_BIG = -1e30   # class-lane padding for log-softmax (exp -> 0 exactly)
_NEG_PAD = -1e4    # logit padding for BCE-with-logits (padded loss == 0 exactly)


# ----------------------------------------------------------------------------
# Host-side constants / helpers.
# ----------------------------------------------------------------------------
def _bilinear_resize_matrix(out_n, in_n):
    """(out_n, in_n) matrix reproducing F.interpolate(mode='bilinear',
    align_corners=False, antialias=False) along one axis."""
    A = np.zeros((out_n, in_n), np.float32)
    if in_n == 1:
        A[:, 0] = 1.0
        return A
    scale = in_n / out_n
    for i in range(out_n):
        x = (i + 0.5) * scale - 0.5
        x = min(max(x, 0.0), in_n - 1.0)   # boundary handling == index clamping
        x0 = int(np.floor(x))
        x1 = min(x0 + 1, in_n - 1)
        f = x - x0
        A[i, x0] += 1.0 - f
        A[i, x1] += f
    return A


def _pad_axis(x, axis, mult, fill):
    n = x.shape[axis]
    pad = (-n) % mult
    if pad == 0:
        return x
    widths = [(0, 0)] * x.ndim
    widths[axis] = (0, pad)
    return jnp.pad(x, widths, constant_values=fill)


def _bce_with_logits(x, y):
    # Numerically stable BCE-with-logits (same formula PyTorch uses).
    return jnp.maximum(x, 0.0) - x * y + jnp.log(1.0 + jnp.exp(-jnp.abs(x)))


# ----------------------------------------------------------------------------
# Fused SetCriterion kernel (one grid step; total work is tiny, so splitting
# for megacore would only add per-step overhead).
# ----------------------------------------------------------------------------
def _build_criterion_kernel(n_assoc, n_box_rows, n_box_cls, alpha):
    inv_assoc = 1.0 / float(n_assoc)
    inv_box = 1.0 / float(n_box_rows * n_box_cls)

    def kernel(a_x_ref, a_y_ref, b_x_ref, b_t_ref,
               i_x_ref, i_y_ref, m_ref, uh_ref, uwt_ref, o_ref):
        # ---------------- loss_assoc: weighted BCE-with-logits, mean. --------
        ax = a_x_ref[...]                               # (R, 128) lane-dense
        ay = a_y_ref[...]
        w = 1.0 + 3.0 * ay                              # lab*4 + (1 - lab)
        l_assoc = jnp.sum(w * _bce_with_logits(ax, ay)) * inv_assoc

        # ---------------- loss_bbox: -t * log_softmax, mean over classes/rows.
        bx = b_x_ref[...]                               # (rows, Cpad)
        bt = b_t_ref[...]
        row_max = jnp.max(bx, axis=-1, keepdims=True)
        lse = row_max + jnp.log(jnp.sum(jnp.exp(bx - row_max),
                                        axis=-1, keepdims=True))
        # padded lanes: bt == 0 and (lse - bx) finite  ->  exact 0 contribution
        l_boxes = jnp.sum(bt * (lse - bx)) * inv_box

        # ---------------- loss_init_points: focal loss * resized mask. -------
        # Separable bilinear resize == two small MXU matmuls (perf feedback:
        # MXU matmuls instead of serial VALU accumulate chains / dense
        # Kronecker matrix).
        m_rs = jnp.dot(jnp.dot(uh_ref[...], m_ref[...],
                               preferred_element_type=jnp.float32),
                       uwt_ref[...],
                       preferred_element_type=jnp.float32)     # (Hi, Wi)
        ix = i_x_ref[...]                               # (Hi, Wi) logits
        iy = i_y_ref[...]                               # (Hi, Wi) {0,1} labels
        bce = _bce_with_logits(ix, iy)
        pt = jnp.exp(-bce)
        at = jnp.where(iy > 0.5, 1.0 - alpha, alpha)
        one_m_pt = 1.0 - pt
        fl = at * one_m_pt * one_m_pt * bce             # gamma == 2 (default)
        # PyTorch computes (fl[1,H,W] * mask[H,1,W]).mean(); that broadcast
        # makes the effective per-pixel weight the COLUMN-MEAN of the mask.
        # Reproduce it exactly without materializing the (H,H,W) broadcast.
        col_w = jnp.mean(m_rs, axis=0, keepdims=True)   # (1, Wi)
        l_init = jnp.mean(fl * col_w)

        # Lane-dense scalar packing: losses at lanes 0..2 of a (1, 128) row.
        lane = lax.broadcasted_iota(jnp.int32, (1, 128), 1)
        o_ref[...] = (jnp.where(lane == 0, l_assoc, 0.0)
                      + jnp.where(lane == 1, l_boxes, 0.0)
                      + jnp.where(lane == 2, l_init, 0.0))

    return kernel


# ----------------------------------------------------------------------------
# Wrapper: SetCriterion.forward for the reachable, fully-specified losses.
# ----------------------------------------------------------------------------
def set_criterion_forward(outputs, targets, dt_targets,
                          losses=("assoc", "boxes", "loss_init_points")):
    """Computes {'loss_assoc', 'loss_bbox', 'loss_init_points'} (subset chosen
    by `losses`) in one fused pallas_call.

    # TODO(synk): 'naive_intersection_loss' is not implemented (external
    # `bezier` module + data-dependent host-side GT-order preprocessing).
    """
    tgt = targets[0]

    # ---- loss_assoc operands: flatten + pad to (rows, 128) lane-dense tiles.
    est = outputs["pred_assoc"].astype(jnp.float32).reshape(-1)
    lab = tgt["con_matrix"].astype(jnp.float32).reshape(-1)
    n_assoc = est.shape[0]
    a_x = _pad_axis(est, 0, 1024, _NEG_PAD).reshape(-1, 128)
    a_y = _pad_axis(lab, 0, 1024, 0.0).reshape(-1, 128)

    # ---- loss_bbox operands.
    # TODO(synk): the original builds soft targets with the external CPU/numpy
    # routine utils.dt_targets_from_class(poly_class, grid_size, dt_threshold);
    # they are accepted here as the precomputed input `dt_targets`.
    logits = outputs["logits"].astype(jnp.float32)
    n_cls = logits.shape[-1]
    b_x = logits[:, 1:, :].reshape(-1, n_cls)
    b_t = dt_targets.astype(jnp.float32)[:, 1:, :].reshape(-1, n_cls)
    n_box_rows = b_x.shape[0]
    b_x = _pad_axis(_pad_axis(b_x, 1, 128, _NEG_BIG), 0, 8, 0.0)
    b_t = _pad_axis(_pad_axis(b_t, 1, 128, 0.0), 0, 8, 0.0)

    # ---- loss_init_points operands.
    i_x = outputs["pred_init_point"].astype(jnp.float32)[0]           # (Hi,Wi)
    i_y = (tgt["init_point_matrix"].astype(jnp.float32).sum(0)
           .clip(0.0, 1.0) > 0.5).astype(jnp.float32)                 # (Hi,Wi)
    m_small = tgt["mask"].astype(jnp.float32)[0]                      # (Hm,Wm)
    hi, wi = i_x.shape
    uh = jnp.asarray(_bilinear_resize_matrix(hi, m_small.shape[0]))   # (Hi,Hm)
    uwt = jnp.asarray(_bilinear_resize_matrix(wi, m_small.shape[1]).T)  # (Wm,Wi)

    args = (a_x, a_y, b_x, b_t, i_x, i_y, m_small, uh, uwt)

    flops = int(10 * a_x.size + 8 * b_x.size
                + 2 * hi * m_small.size + 2 * hi * wi * m_small.shape[1]
                + 16 * i_x.size)
    transcend = int(2 * a_x.size + b_x.size + 2 * i_x.size)
    bytes_accessed = int(4 * (sum(int(a.size) for a in args) + 128))

    res = pl.pallas_call(
        _build_criterion_kernel(n_assoc, n_box_rows, n_cls, alpha=0.5),
        out_shape=jax.ShapeDtypeStruct((1, 128), jnp.float32),
        grid=(1,),
        # Every operand is tiny -> full-array blocks resident in VMEM.
        in_specs=[pl.BlockSpec(a.shape, lambda i: (0, 0)) for a in args],
        out_specs=pl.BlockSpec((1, 128), lambda i: (0, 0)),
        compiler_params=pltpu.CompilerParams(
            dimension_semantics=("arbitrary",),
            vmem_limit_bytes=32 * 1024 * 1024,
        ),
        cost_estimate=pl.CostEstimate(flops=flops, transcendentals=transcend,
                                      bytes_accessed=bytes_accessed),
    )(*args)

    out = {}
    if "assoc" in losses:
        out["loss_assoc"] = res[0, 0]
    if "boxes" in losses:
        out["loss_bbox"] = res[0, 1]
    if "loss_init_points" in losses:
        out["loss_init_points"] = res[0, 2]
    return out


# ----------------------------------------------------------------------------
# Pure-JAX reference (mirrors the PyTorch code; verification only).
# ----------------------------------------------------------------------------
def set_criterion_reference(outputs, targets, dt_targets):
    tgt = targets[0]
    ref = {}

    # loss_assoc
    est = outputs["pred_assoc"].astype(jnp.float32)
    lab = tgt["con_matrix"].astype(jnp.float32)
    w = lab * 4.0 + (1.0 - lab)
    ref["loss_assoc"] = jnp.mean(w * _bce_with_logits(est, lab))

    # loss_bbox
    logits = outputs["logits"].astype(jnp.float32)
    n_cls = logits.shape[-1]
    lg = logits[:, 1:, :].reshape(-1, n_cls)
    tg = dt_targets.astype(jnp.float32)[:, 1:, :].reshape(-1, n_cls)
    lsm = jax.nn.log_softmax(lg, axis=-1)
    ref["loss_bbox"] = jnp.mean(jnp.mean(-tg * lsm, axis=1))

    # loss_init_points (faithful to the PyTorch broadcasting of mask.unsqueeze(1))
    i_x = outputs["pred_init_point"].astype(jnp.float32)              # (1,H,W)
    labels = (tgt["init_point_matrix"].astype(jnp.float32).sum(0)
              .clip(0.0, 1.0) > 0.5).astype(jnp.float32)              # (H,W)
    m_small = tgt["mask"].astype(jnp.float32)[0]
    hi, wi = i_x.shape[-2:]
    uh = jnp.asarray(_bilinear_resize_matrix(hi, m_small.shape[0]))
    uw = jnp.asarray(_bilinear_resize_matrix(wi, m_small.shape[1]))
    m_rs = uh @ m_small @ uw.T                                        # (H,W)
    bce = _bce_with_logits(i_x, labels[None])
    pt = jnp.exp(-bce)
    at = jnp.where(labels[None] > 0.5, 1.0 - 0.5, 0.5)
    fl = at * (1.0 - pt) ** 2 * bce                                   # (1,H,W)
    ref["loss_init_points"] = jnp.mean(fl * m_rs[:, None, :])         # (H,H,W)
    return ref


# ----------------------------------------------------------------------------
# Demo / self-check.
# ----------------------------------------------------------------------------
if __name__ == "__main__":
    key = jax.random.PRNGKey(0)
    k = jax.random.split(key, 7)

    n_queries = 30                     # pred_assoc / con_matrix are Q x Q
    n_lines, n_steps = 12, 3           # 'logits': (n_lines, n_control_points, C)
    grid_size = 50                     # SetCriterion.grid_size
    n_cls = grid_size * grid_size + 1  # 2501
    heat = 100                         # pred_init_point heat-map resolution
    hm, wm = 50, 50                    # native target-mask resolution

    outputs = {
        "pred_assoc": jax.random.normal(k[0], (n_queries, n_queries), jnp.float32),
        "logits": jax.random.normal(k[1], (n_lines, n_steps, n_cls), jnp.float32),
        "pred_init_point": jax.random.normal(k[2], (1, heat, heat), jnp.float32),
    }
    targets = [{
        "con_matrix": (jax.random.uniform(k[3], (n_queries, n_queries)) > 0.7
                       ).astype(jnp.float32),
        "init_point_matrix": (jax.random.uniform(k[4], (4, heat, heat)) > 0.995
                              ).astype(jnp.float32),
        "mask": (jax.random.uniform(k[5], (1, hm, wm)) > 0.3).astype(jnp.float32),
    }]
    # Stand-in for utils.dt_targets_from_class(...) soft targets (a host-side
    # CPU/numpy routine in the original); any row-stochastic target is a valid
    # input for the numerics check.
    dt_targets = jax.nn.softmax(
        jax.random.normal(k[6], (n_lines, n_steps, n_cls), jnp.float32), axis=-1)

    got = set_criterion_forward(outputs, targets, dt_targets,
                                losses=("assoc", "boxes", "loss_init_points"))
    got = jax.block_until_ready(got)
    ref = set_criterion_reference(outputs, targets, dt_targets)

    for name, want in ref.items():
        have = got[name]
        if not bool(jnp.allclose(have, want, rtol=1e-3, atol=1e-6)):
            raise AssertionError(
                f"{name}: pallas={float(have)} ref={float(want)}")
    print("KERNEL_OK")
</pallas_src>

<mosaic_0001>
module attributes {stable_mosaic.version = 11 : i64} {
  func.func @kernel(%arg0: i32, %arg1: memref<8x128xf32, #tpu.memory_space<vmem>>, %arg2: memref<8x128xf32, #tpu.memory_space<vmem>>, %arg3: memref<24x2560xf32, #tpu.memory_space<vmem>>, %arg4: memref<24x2560xf32, #tpu.memory_space<vmem>>, %arg5: memref<100x100xf32, #tpu.memory_space<vmem>>, %arg6: memref<100x100xf32, #tpu.memory_space<vmem>>, %arg7: memref<50x50xf32, #tpu.memory_space<vmem>>, %arg8: memref<100x50xf32, #tpu.memory_space<vmem>>, %arg9: memref<50x100xf32, #tpu.memory_space<vmem>>, %arg10: memref<1x128xf32, #tpu.memory_space<vmem>>) attributes {dimension_semantics = [#tpu.dimension_semantics<arbitrary>], iteration_bounds = array<i64: 1>, scalar_prefetch = 0 : i64, scratch_operands = 0 : i64, tpu.core_type = #tpu.core_type<tc>, window_params = [{pipeline_mode = #tpu.pipeline_mode<synchronous>, transform_indices = @transform_0, window_bounds = array<i64: 8, 128>}, {pipeline_mode = #tpu.pipeline_mode<synchronous>, transform_indices = @transform_1, window_bounds = array<i64: 8, 128>}, {pipeline_mode = #tpu.pipeline_mode<synchronous>, transform_indices = @transform_2, window_bounds = array<i64: 24, 2560>}, {pipeline_mode = #tpu.pipeline_mode<synchronous>, transform_indices = @transform_3, window_bounds = array<i64: 24, 2560>}, {pipeline_mode = #tpu.pipeline_mode<synchronous>, transform_indices = @transform_4, window_bounds = array<i64: 100, 100>}, {pipeline_mode = #tpu.pipeline_mode<synchronous>, transform_indices = @transform_5, window_bounds = array<i64: 100, 100>}, {pipeline_mode = #tpu.pipeline_mode<synchronous>, transform_indices = @transform_6, window_bounds = array<i64: 50, 50>}, {pipeline_mode = #tpu.pipeline_mode<synchronous>, transform_indices = @transform_7, window_bounds = array<i64: 100, 50>}, {pipeline_mode = #tpu.pipeline_mode<synchronous>, transform_indices = @transform_8, window_bounds = array<i64: 50, 100>}, {pipeline_mode = #tpu.pipeline_mode<synchronous>, transform_indices = @transform_9, window_bounds = array<i64: 1, 128>}]} {
    %c0 = arith.constant 0 : index
    %c0_0 = arith.constant 0 : index
    %0 = vector.load %arg1[%c0, %c0_0] : memref<8x128xf32, #tpu.memory_space<vmem>>, vector<8x128xf32>
    %c0_1 = arith.constant 0 : index
    %c0_2 = arith.constant 0 : index
    %1 = vector.load %arg2[%c0_1, %c0_2] : memref<8x128xf32, #tpu.memory_space<vmem>>, vector<8x128xf32>
    %cst = arith.constant 3.000000e+00 : f32
    %2 = vector.broadcast %cst : f32 to vector<8x128xf32>
    %3 = arith.mulf %2, %1 : vector<8x128xf32>
    %cst_3 = arith.constant 1.000000e+00 : f32
    %4 = vector.broadcast %cst_3 : f32 to vector<8x128xf32>
    %5 = arith.addf %4, %3 : vector<8x128xf32>
    %cst_4 = arith.constant 0.000000e+00 : f32
    %6 = vector.broadcast %cst_4 : f32 to vector<8x128xf32>
    %7 = arith.maximumf %0, %6 : vector<8x128xf32>
    %8 = arith.mulf %0, %1 : vector<8x128xf32>
    %9 = arith.subf %7, %8 : vector<8x128xf32>
    %10 = math.absf %0 : vector<8x128xf32>
    %cst_5 = arith.constant 0.000000e+00 : f32
    %11 = vector.broadcast %cst_5 : f32 to vector<8x128xf32>
    %12 = arith.subf %11, %10 : vector<8x128xf32>
    %13 = math.exp %12 : vector<8x128xf32>
    %cst_6 = arith.constant 1.000000e+00 : f32
    %14 = vector.broadcast %cst_6 : f32 to vector<8x128xf32>
    %15 = arith.addf %14, %13 : vector<8x128xf32>
    %16 = math.log %15 : vector<8x128xf32>
    %17 = arith.addf %9, %16 : vector<8x128xf32>
    %18 = arith.mulf %5, %17 : vector<8x128xf32>
    %19 = vector.shape_cast %18 : vector<8x128xf32> to vector<1x8x128xf32>
    %cst_7 = arith.constant dense<0.000000e+00> : vector<1xf32>
    %20 = vector.multi_reduction <add>, %19, %cst_7 [1, 2] : vector<1x8x128xf32> to vector<1xf32>
    %21 = vector.shape_cast %20 : vector<1xf32> to vector<1x1x1xf32>
    %22 = vector.extract %21[0, 0, 0] : f32 from vector<1x1x1xf32>
    %cst_8 = arith.constant 0.00111111114 : f32
    %23 = arith.mulf %22, %cst_8 : f32
    %c0_9 = arith.constant 0 : index
    %c0_10 = arith.constant 0 : index
    %24 = vector.load %arg3[%c0_9, %c0_10] : memref<24x2560xf32, #tpu.memory_space<vmem>>, vector<24x2560xf32>
    %c0_11 = arith.constant 0 : index
    %c0_12 = arith.constant 0 : index
    %25 = vector.load %arg4[%c0_11, %c0_12] : memref<24x2560xf32, #tpu.memory_space<vmem>>, vector<24x2560xf32>
    %cst_13 = arith.constant dense<0xFF800000> : vector<24xf32>
    %26 = vector.multi_reduction <maximumf>, %24, %cst_13 [1] : vector<24x2560xf32> to vector<24xf32>
    %27 = vector.shape_cast %26 : vector<24xf32> to vector<24x1xf32>
    %28 = vector.broadcast %27 : vector<24x1xf32> to vector<24x2560xf32>
    %29 = arith.subf %24, %28 : vector<24x2560xf32>
    %30 = math.exp %29 : vector<24x2560xf32>
    %cst_14 = arith.constant dense<0.000000e+00> : vector<24xf32>
    %31 = vector.multi_reduction <add>, %30, %cst_14 [1] : vector<24x2560xf32> to vector<24xf32>
    %32 = vector.shape_cast %31 : vector<24xf32> to vector<24x1xf32>
    %33 = math.log %32 : vector<24x1xf32>
    %34 = arith.addf %27, %33 : vector<24x1xf32>
    %35 = vector.broadcast %34 : vector<24x1xf32> to vector<24x2560xf32>
    %36 = arith.subf %35, %24 : vector<24x2560xf32>
    %37 = arith.mulf %25, %36 : vector<24x2560xf32>
    %38 = vector.shape_cast %37 : vector<24x2560xf32> to vector<1x24x2560xf32>
    %cst_15 = arith.constant dense<0.000000e+00> : vector<1xf32>
    %39 = vector.multi_reduction <add>, %38, %cst_15 [1, 2] : vector<1x24x2560xf32> to vector<1xf32>
    %40 = vector.shape_cast %39 : vector<1xf32> to vector<1x1x1xf32>
    %41 = vector.extract %40[0, 0, 0] : f32 from vector<1x1x1xf32>
    %cst_16 = arith.constant 1.66600021E-5 : f32
    %42 = arith.mulf %41, %cst_16 : f32
    %c0_17 = arith.constant 0 : index
    %c0_18 = arith.constant 0 : index
    %43 = vector.load %arg8[%c0_17, %c0_18] : memref<100x50xf32, #tpu.memory_space<vmem>>, vector<100x50xf32>
    %c0_19 = arith.constant 0 : index
    %c0_20 = arith.constant 0 : index
    %44 = vector.load %arg7[%c0_19, %c0_20] : memref<50x50xf32, #tpu.memory_space<vmem>>, vector<50x50xf32>
    %cst_21 = arith.constant dense<0.000000e+00> : vector<100x50xf32>
    %45 = tpu.matmul %43, %44, %cst_21 {dimension_numbers = #tpu.dot_dimension_numbers<[1], [0], [0], [1], [0, 0, 1, 1], [], []>} : vector<100x50xf32>, vector<50x50xf32>, vector<100x50xf32> -> vector<100x50xf32>
    %c0_22 = arith.constant 0 : index
    %c0_23 = arith.constant 0 : index
    %46 = vector.load %arg9[%c0_22, %c0_23] : memref<50x100xf32, #tpu.memory_space<vmem>>, vector<50x100xf32>
    %cst_24 = arith.constant dense<0.000000e+00> : vector<100x100xf32>
    %47 = tpu.matmul %45, %46, %cst_24 {dimension_numbers = #tpu.dot_dimension_numbers<[1], [0], [0], [1], [0, 0, 1, 1], [], []>} : vector<100x50xf32>, vector<50x100xf32>, vector<100x100xf32> -> vector<100x100xf32>
    %c0_25 = arith.constant 0 : index
    %c0_26 = arith.constant 0 : index
    %48 = vector.load %arg5[%c0_25, %c0_26] : memref<100x100xf32, #tpu.memory_space<vmem>>, vector<100x100xf32>
    %c0_27 = arith.constant 0 : index
    %c0_28 = arith.constant 0 : index
    %49 = vector.load %arg6[%c0_27, %c0_28] : memref<100x100xf32, #tpu.memory_space<vmem>>, vector<100x100xf32>
    %cst_29 = arith.constant 0.000000e+00 : f32
    %50 = vector.broadcast %cst_29 : f32 to vector<100x100xf32>
    %51 = arith.maximumf %48, %50 : vector<100x100xf32>
    %52 = arith.mulf %48, %49 : vector<100x100xf32>
    %53 = arith.subf %51, %52 : vector<100x100xf32>
    %54 = math.absf %48 : vector<100x100xf32>
    %cst_30 = arith.constant 0.000000e+00 : f32
    %55 = vector.broadcast %cst_30 : f32 to vector<100x100xf32>
    %56 = arith.subf %55, %54 : vector<100x100xf32>
    %57 = math.exp %56 : vector<100x100xf32>
    %cst_31 = arith.constant 1.000000e+00 : f32
    %58 = vector.broadcast %cst_31 : f32 to vector<100x100xf32>
    %59 = arith.addf %58, %57 : vector<100x100xf32>
    %60 = math.log %59 : vector<100x100xf32>
    %61 = arith.addf %53, %60 : vector<100x100xf32>
    %cst_32 = arith.constant 0.000000e+00 : f32
    %62 = vector.broadcast %cst_32 : f32 to vector<100x100xf32>
    %63 = arith.subf %62, %61 : vector<100x100xf32>
    %64 = math.exp %63 : vector<100x100xf32>
    %cst_33 = arith.constant 5.000000e-01 : f32
    %65 = vector.broadcast %cst_33 : f32 to vector<100x100xf32>
    %66 = arith.cmpf ogt, %49, %65 : vector<100x100xf32>
    %cst_34 = arith.constant 5.000000e-01 : f32
    %cst_35 = arith.constant 5.000000e-01 : f32
    %67 = vector.broadcast %cst_34 : f32 to vector<100x100xf32>
    %68 = vector.broadcast %cst_35 : f32 to vector<100x100xf32>
    %69 = arith.select %66, %67, %68 : vector<100x100xi1>, vector<100x100xf32>
    %cst_36 = arith.constant 1.000000e+00 : f32
    %70 = vector.broadcast %cst_36 : f32 to vector<100x100xf32>
    %71 = arith.subf %70, %64 : vector<100x100xf32>
    %72 = arith.mulf %69, %71 : vector<100x100xf32>
    %73 = arith.mulf %72, %71 : vector<100x100xf32>
    %74 = arith.mulf %73, %61 : vector<100x100xf32>
    %cst_37 = arith.constant dense<0.000000e+00> : vector<100xf32>
    %75 = vector.multi_reduction <add>, %47, %cst_37 [0] : vector<100x100xf32> to vector<100xf32>
    %76 = vector.shape_cast %75 : vector<100xf32> to vector<1x100xf32>
    %cst_38 = arith.constant 1.000000e+02 : f32
    %77 = vector.broadcast %cst_38 : f32 to vector<1x100xf32>
    %78 = arith.divf %76, %77 : vector<1x100xf32>
    %79 = vector.broadcast %78 : vector<1x100xf32> to vector<100x100xf32>
    %80 = arith.mulf %74, %79 : vector<100x100xf32>
    %81 = vector.shape_cast %80 : vector<100x100xf32> to vector<1x100x100xf32>
    %cst_39 = arith.constant dense<0.000000e+00> : vector<1xf32>
    %82 = vector.multi_reduction <add>, %81, %cst_39 [1, 2] : vector<1x100x100xf32> to vector<1xf32>
    %83 = vector.shape_cast %82 : vector<1xf32> to vector<1x1x1xf32>
    %84 = vector.extract %83[0, 0, 0] : f32 from vector<1x1x1xf32>
    %cst_40 = arith.constant 1.000000e+04 : f32
    %85 = arith.divf %84, %cst_40 : f32
    %86 = tpu.iota {dimensions = array<i32: 1>} : vector<1x128xi32>
    %c0_i32 = arith.constant 0 : i32
    %87 = vector.broadcast %c0_i32 : i32 to vector<1x128xi32>
    %88 = arith.cmpi eq, %86, %87 : vector<1x128xi32>
    %cst_41 = arith.constant 0.000000e+00 : f32
    %89 = vector.broadcast %23 : f32 to vector<1x128xf32>
    %90 = vector.broadcast %cst_41 : f32 to vector<1x128xf32>
    %91 = arith.select %88, %89, %90 : vector<1x128xi1>, vector<1x128xf32>
    %c1_i32 = arith.constant 1 : i32
    %92 = vector.broadcast %c1_i32 : i32 to vector<1x128xi32>
    %93 = arith.cmpi eq, %86, %92 : vector<1x128xi32>
    %cst_42 = arith.constant 0.000000e+00 : f32
    %94 = vector.broadcast %42 : f32 to vector<1x128xf32>
    %95 = vector.broadcast %cst_42 : f32 to vector<1x128xf32>
    %96 = arith.select %93, %94, %95 : vector<1x128xi1>, vector<1x128xf32>
    %97 = arith.addf %91, %96 : vector<1x128xf32>
    %c2_i32 = arith.constant 2 : i32
    %98 = vector.broadcast %c2_i32 : i32 to vector<1x128xi32>
    %99 = arith.cmpi eq, %86, %98 : vector<1x128xi32>
    %cst_43 = arith.constant 0.000000e+00 : f32
    %100 = vector.broadcast %85 : f32 to vector<1x128xf32>
    %101 = vector.broadcast %cst_43 : f32 to vector<1x128xf32>
    %102 = arith.select %99, %100, %101 : vector<1x128xi1>, vector<1x128xf32>
    %103 = arith.addf %97, %102 : vector<1x128xf32>
    %c0_44 = arith.constant 0 : index
    %c0_45 = arith.constant 0 : index
    %104 = vector.load %arg10[%c0_44, %c0_45] : memref<1x128xf32, #tpu.memory_space<vmem>>, vector<1x128xf32>
    tpu.vector_store %arg10[%c0_44, %c0_45], %103 {strides = array<i32>} : memref<1x128xf32, #tpu.memory_space<vmem>>, vector<1x128xf32>,
    return
  }
  func.func @transform_0(%arg0: i32) -> (i32, i32) {
    %c0_i32 = arith.constant 0 : i32
    %c0_i32_0 = arith.constant 0 : i32
    %c0_i32_1 = arith.constant 0 : i32
    return %c0_i32, %c0_i32_0 : i32, i32
  }
  func.func @transform_1(%arg0: i32) -> (i32, i32) {
    %c0_i32 = arith.constant 0 : i32
    %c0_i32_0 = arith.constant 0 : i32
    %c0_i32_1 = arith.constant 0 : i32
    return %c0_i32, %c0_i32_0 : i32, i32
  }
  func.func @transform_2(%arg0: i32) -> (i32, i32) {
    %c0_i32 = arith.constant 0 : i32
    %c0_i32_0 = arith.constant 0 : i32
    %c0_i32_1 = arith.constant 0 : i32
    return %c0_i32, %c0_i32_0 : i32, i32
  }
  func.func @transform_3(%arg0: i32) -> (i32, i32) {
    %c0_i32 = arith.constant 0 : i32
    %c0_i32_0 = arith.constant 0 : i32
    %c0_i32_1 = arith.constant 0 : i32
    return %c0_i32, %c0_i32_0 : i32, i32
  }
  func.func @transform_4(%arg0: i32) -> (i32, i32) {
    %c0_i32 = arith.constant 0 : i32
    %c0_i32_0 = arith.constant 0 : i32
    %c0_i32_1 = arith.constant 0 : i32
    return %c0_i32, %c0_i32_0 : i32, i32
  }
  func.func @transform_5(%arg0: i32) -> (i32, i32) {
    %c0_i32 = arith.constant 0 : i32
    %c0_i32_0 = arith.constant 0 : i32
    %c0_i32_1 = arith.constant 0 : i32
    return %c0_i32, %c0_i32_0 : i32, i32
  }
  func.func @transform_6(%arg0: i32) -> (i32, i32) {
    %c0_i32 = arith.constant 0 : i32
    %c0_i32_0 = arith.constant 0 : i32
    %c0_i32_1 = arith.constant 0 : i32
    return %c0_i32, %c0_i32_0 : i32, i32
  }
  func.func @transform_7(%arg0: i32) -> (i32, i32) {
    %c0_i32 = arith.constant 0 : i32
    %c0_i32_0 = arith.constant 0 : i32
    %c0_i32_1 = arith.constant 0 : i32
    return %c0_i32, %c0_i32_0 : i32, i32
  }
  func.func @transform_8(%arg0: i32) -> (i32, i32) {
    %c0_i32 = arith.constant 0 : i32
    %c0_i32_0 = arith.constant 0 : i32
    %c0_i32_1 = arith.constant 0 : i32
    return %c0_i32, %c0_i32_0 : i32, i32
  }
  func.func @transform_9(%arg0: i32) -> (i32, i32) {
    %c0_i32 = arith.constant 0 : i32
    %c0_i32_0 = arith.constant 0 : i32
    %c0_i32_1 = arith.constant 0 : i32
    return %c0_i32, %c0_i32_0 : i32, i32
  }
}

</mosaic_0001>

<llo_original>
// kernel: tpu_custom_call.1
$region0: #{tpu_custom_call.1}
  #allocation0 [shape = 'u32[]', space=smem, size = 0x4, offset = 0x4, fixed_abs, tag = 'smem constant byte address 0x4 - core index']
  #allocation1 [shape = 'u32[144,128]{1,0:T(1,128)}', space=vmem, size = 0x12000, scoped, tag = 'internal scratch']
  %s0 = inlined_call_operand.hbm [shape: f32[8,128], index: 0, kind: input, shape index: {}]
  %s1 = inlined_call_operand.hbm [shape: f32[8,128], index: 1, kind: input, shape index: {}]
  %s2 = inlined_call_operand.hbm [shape: f32[24,2560], index: 2, kind: input, shape index: {}]
  %s3 = inlined_call_operand.hbm [shape: f32[24,2560], index: 3, kind: input, shape index: {}]
  %s4 = inlined_call_operand.vmem [shape: f32[100,100], index: 4, kind: input, shape index: {}]
  %s5 = inlined_call_operand.hbm [shape: f32[100,100], index: 5, kind: input, shape index: {}]
  %s6 = inlined_call_operand.vmem [shape: f32[50,50], index: 6, kind: input, shape index: {}]
  %s7 = inlined_call_operand.vmem [shape: f32[100,50], index: 7, kind: input, shape index: {}]
  %s8 = inlined_call_operand.hbm [shape: f32[50,100], index: 8, kind: input, shape index: {}]
  %s9 = inlined_call_operand.hbm [shape: f32[1,128], index: 9, kind: output, shape index: {}]
  %s10 = sld [smem:[#allocation0]]
  $region70: #{tpu_custom_call.1} parent=0
    _
  %s12 = ssub.s32 1, %s10
  %s13 = scalar_select 0, %s12, %s10
  $region1: #{tpu_custom_call.1} parent=0
    #allocation2 [shape = 'u8[4096]{0}', space=vmem, size = 0x1000, scoped, tag = 'input window, operand 0, single buffered']
    #allocation3 [shape = 's32[1]{0}', space=sflag, size = 0x4, scoped, tag = 'scoped memory for tpu_custom_call.1']
    #allocation4 [shape = 's32[1]{0}', space=sflag, size = 0x4, scoped, tag = 'scoped memory for tpu_custom_call.1']
    #allocation5 [shape = 'u8[4096]{0}', space=vmem, size = 0x1000, scoped, tag = 'input window, operand 1, single buffered']
    #allocation6 [shape = 's32[1]{0}', space=sflag, size = 0x4, scoped, tag = 'scoped memory for tpu_custom_call.1']
    #allocation7 [shape = 'u8[245760]{0}', space=vmem, size = 0x3c000, scoped, tag = 'input window, operand 2, single buffered']
    #allocation8 [shape = 'u8[245760]{0}', space=vmem, size = 0x3c000, scoped, tag = 'input window, operand 3, single buffered']
    #allocation9 [shape = 's32[1]{0}', space=sflag, size = 0x4, scoped, tag = 'scoped memory for tpu_custom_call.1']
    #allocation10 [shape = 'u8[53248]{0}', space=vmem, size = 0xd000, scoped, tag = 'input window, operand 5, single buffered']
    #allocation11 [shape = 'u8[28672]{0}', space=vmem, size = 0x7000, scoped, tag = 'input window, operand 8, single buffered']
    #allocation12 [shape = 's32[1]{0}', space=sflag, size = 0x4, scoped, tag = 'scoped memory for tpu_custom_call.1']
    #allocation13 [shape = 'u8[512]{0}', space=vmem, size = 0x400, scoped, tag = 'output window, operand 0, single buffered']
    %14 = vsyncpa [#allocation3], 0
    %15 = vsyncpa [#allocation6], 0
    %16 = vsyncpa [#allocation9], 0
    %17 = vsyncpa [#allocation12], 0
    %18 = vsyncpa [#allocation4], 0
    // Predicated region
    $region2: #{tpu_custom_call.1} parent=1 // pred_check
      _
    $region3: #{tpu_custom_call.1} parent=1 // pred_check_branch
      %20 = sbr.rel (0) target = $region5
    $region4: #{tpu_custom_call.1} parent=1 // pred_region
      %s22 = ssub.s32 128, 128
      %23 = vsyncadd [#allocation3], %s22
      %s25 = sshll.u32 [#allocation2], 4
      %s26 = int_to_ptr.vmem [resolvable:$true] %s25
      %28 = dma.hbm_to_vmem [thread:$0]  %s0, 128, %s26, [#allocation3]
    $region5: #{tpu_custom_call.1} parent=1 // pred_fallthru
      _
    // Predicated region
    $region6: #{tpu_custom_call.1} parent=1 // pred_check
      _
    $region7: #{tpu_custom_call.1} parent=1 // pred_check_branch
      %30 = sbr.rel (0) target = $region9
    $region8: #{tpu_custom_call.1} parent=1 // pred_region
      %s32 = ssub.s32 128, 128
      %33 = vsyncadd [#allocation6], %s32
      %s35 = sshll.u32 [#allocation5], 4
      %s36 = int_to_ptr.vmem [resolvable:$true] %s35
      %38 = dma.hbm_to_vmem [thread:$0]  %s1, 128, %s36, [#allocation6]
    $region9: #{tpu_custom_call.1} parent=1 // pred_fallthru
      _
    // Predicated region
    $region10: #{tpu_custom_call.1} parent=1 // pred_check
      _
    $region11: #{tpu_custom_call.1} parent=1 // pred_check_branch
      %40 = sbr.rel (0) target = $region13
    $region12: #{tpu_custom_call.1} parent=1 // pred_region
      %s42 = ssub.s32 7680, 7680
      %43 = vsyncadd [#allocation6], %s42
      %s44 = sshll.u32 [#allocation7], 4
      %s45 = int_to_ptr.vmem [resolvable:$true] %s44
      %50 = dma.hbm_to_vmem [thread:$0]  %s2, 7680, %s45, [#allocation6], 2560, 2560, 160
    $region13: #{tpu_custom_call.1} parent=1 // pred_fallthru
      _
    // Predicated region
    $region14: #{tpu_custom_call.1} parent=1 // pred_check
      _
    $region15: #{tpu_custom_call.1} parent=1 // pred_check_branch
      %52 = sbr.rel (0) target = $region17
    $region16: #{tpu_custom_call.1} parent=1 // pred_region
      %s54 = ssub.s32 7680, 7680
      %55 = vsyncadd [#allocation9], %s54
      %s56 = sshll.u32 [#allocation8], 4
      %s57 = int_to_ptr.vmem [resolvable:$true] %s56
      %62 = dma.hbm_to_vmem [thread:$0]  %s3, 7680, %s57, [#allocation9], 2560, 2560, 160
    $region17: #{tpu_custom_call.1} parent=1 // pred_fallthru
      _
    // Predicated region
    $region18: #{tpu_custom_call.1} parent=1 // pred_check
      _
    $region19: #{tpu_custom_call.1} parent=1 // pred_check_branch
      %64 = sbr.rel (0) target = $region21
    $region20: #{tpu_custom_call.1} parent=1 // pred_region
      _
    $region21: #{tpu_custom_call.1} parent=1 // pred_fallthru
      _
    // Predicated region
    $region22: #{tpu_custom_call.1} parent=1 // pred_check
      _
    $region23: #{tpu_custom_call.1} parent=1 // pred_check_branch
      %66 = sbr.rel (0) target = $region25
    $region24: #{tpu_custom_call.1} parent=1 // pred_region
      %s68 = ssub.s32 1664, 1664
      %69 = vsyncadd [#allocation9], %s68
      %s70 = sshll.u32 [#allocation10], 4
      %s71 = int_to_ptr.vmem [resolvable:$true] %s70
      %76 = dma.hbm_to_vmem [thread:$0]  %s5, 1664, %s71, [#allocation9], 128, 128, 8
    $region25: #{tpu_custom_call.1} parent=1 // pred_fallthru
      _
    // Predicated region
    $region26: #{tpu_custom_call.1} parent=1 // pred_check
      _
    $region27: #{tpu_custom_call.1} parent=1 // pred_check_branch
      %78 = sbr.rel (0) target = $region29
    $region28: #{tpu_custom_call.1} parent=1 // pred_region
      _
    $region29: #{tpu_custom_call.1} parent=1 // pred_fallthru
      _
    // Predicated region
    $region30: #{tpu_custom_call.1} parent=1 // pred_check
      _
    $region31: #{tpu_custom_call.1} parent=1 // pred_check_branch
      %80 = sbr.rel (0) target = $region33
    $region32: #{tpu_custom_call.1} parent=1 // pred_region
      _
    $region33: #{tpu_custom_call.1} parent=1 // pred_fallthru
      _
    // Predicated region
    $region34: #{tpu_custom_call.1} parent=1 // pred_check
      _
    $region35: #{tpu_custom_call.1} parent=1 // pred_check_branch
      %82 = sbr.rel (0) target = $region37
    $region36: #{tpu_custom_call.1} parent=1 // pred_region
      %s84 = ssub.s32 896, 896
      %85 = vsyncadd [#allocation12], %s84
      %s86 = sshll.u32 [#allocation11], 4
      %s87 = int_to_ptr.vmem [resolvable:$true] %s86
      %92 = dma.hbm_to_vmem [thread:$0]  %s8, 896, %s87, [#allocation12], 128, 128, 8
    $region37: #{tpu_custom_call.1} parent=1 // pred_fallthru
      _
    // Predicated region
    $region38: #{tpu_custom_call.1} parent=1 // pred_check
      _
    $region39: #{tpu_custom_call.1} parent=1 // pred_check_branch
      %94 = sbr.rel (0) target = $region41
    $region40: #{tpu_custom_call.1} parent=1 // pred_region
      %95 = dma.done [#allocation3], 128
    $region41: #{tpu_custom_call.1} parent=1 // pred_fallthru
      _
    // Predicated region
    $region42: #{tpu_custom_call.1} parent=1 // pred_check
      _
    $region43: #{tpu_custom_call.1} parent=1 // pred_check_branch
      %97 = sbr.rel (0) target = $region45
    $region44: #{tpu_custom_call.1} parent=1 // pred_region
      %98 = dma.done [#allocation6], 128
    $region45: #{tpu_custom_call.1} parent=1 // pred_fallthru
      _
    // Predicated region
    $region46: #{tpu_custom_call.1} parent=1 // pred_check
      _
    $region47: #{tpu_custom_call.1} parent=1 // pred_check_branch
      %100 = sbr.rel (0) target = $region49
    $region48: #{tpu_custom_call.1} parent=1 // pred_region
      %101 = dma.done [#allocation6], 7680
    $region49: #{tpu_custom_call.1} parent=1 // pred_fallthru
      _
    // Predicated region
    $region50: #{tpu_custom_call.1} parent=1 // pred_check
      _
    $region51: #{tpu_custom_call.1} parent=1 // pred_check_branch
      %103 = sbr.rel (0) target = $region53
    $region52: #{tpu_custom_call.1} parent=1 // pred_region
      %104 = dma.done [#allocation9], 7680
    $region53: #{tpu_custom_call.1} parent=1 // pred_fallthru
      _
    // Predicated region
    $region54: #{tpu_custom_call.1} parent=1 // pred_check
      _
    $region55: #{tpu_custom_call.1} parent=1 // pred_check_branch
      %106 = sbr.rel (0) target = $region57
    $region56: #{tpu_custom_call.1} parent=1 // pred_region
      %107 = dma.done [#allocation9], 1664
    $region57: #{tpu_custom_call.1} parent=1 // pred_fallthru
      _
    // Predicated region
    $region58: #{tpu_custom_call.1} parent=1 // pred_check
      _
    $region59: #{tpu_custom_call.1} parent=1 // pred_check_branch
      %109 = sbr.rel (0) target = $region61
    $region60: #{tpu_custom_call.1} parent=1 // pred_region
      %110 = dma.done [#allocation12], 896
    $region61: #{tpu_custom_call.1} parent=1 // pred_fallthru
      _
    %v111 = vld [vmem:[#allocation2] sm:$0xff]
    %v112 = vld [vmem:[#allocation5] sm:$0xff]
    %v113 = vmul.f32 %v112, 3.0
    %v114 = vadd.f32 %v113, 1.0
    %v115 = vmax.f32 %v111, 0.0
    %v116 = vmul.f32 %v111, %v112
    %v117 = vsub.f32 %v115, %v116
    %v118 = vand.u32 2147483647, %v111
    %v119 = vsub.f32 0.0, %v118
    %v120 = vmul.f32 %v119, 1.442695
    %v121 = vpow.pop %v120
    %v122 = vadd.f32 %v121, 1.0
    %v123 = vlog2.pop %v122
    %v124 = vmul.f32 %v123, 0.6931472
    %v125 = vadd.f32 %v117, %v124
    %v126 = vmul.f32 %v114, %v125
    %127 = vadd.xlane.f32.xlu0 %v126
    %v128 = vpop.xlane.xlu0 %127
    %v129 = vrot.slane %v128, 4
    %v130 = vadd.f32 %v128, %v129
    %v131 = vrot.slane %v130, 2
    %v132 = vadd.f32 %v130, %v131
    %v133 = vrot.slane %v132, 1
    %v134 = vadd.f32 %v132, %v133
    %s135 = vtos %v134
    %s136 = smul.f32 %s135, 0.0011111111
    %v137 = vld [vmem:[#allocation7] sm:$0xff]
    %v138 = vld [vmem:[#allocation7 + $0x8] sm:$0xff]
    %v139 = vld [vmem:[#allocation7 + $0x10] sm:$0xff]
    %v140 = vld [vmem:[#allocation7 + $0x18] sm:$0xff]
    %v141 = vld [vmem:[#allocation7 + $0x20] sm:$0xff]
    %v142 = vld [vmem:[#allocation7 + $0x28] sm:$0xff]
    %v143 = vld [vmem:[#allocation7 + $0x30] sm:$0xff]
    %v144 = vld [vmem:[#allocation7 + $0x38] sm:$0xff]
    %v145 = vld [vmem:[#allocation7 + $0x40] sm:$0xff]
    %v146 = vld [vmem:[#allocation7 + $0x48] sm:$0xff]
    %v147 = vld [vmem:[#allocation7 + $0x50] sm:$0xff]
    %v148 = vld [vmem:[#allocation7 + $0x58] sm:$0xff]
    %v149 = vld [vmem:[#allocation7 + $0x60] sm:$0xff]
    %v150 = vld [vmem:[#allocation7 + $0x68] sm:$0xff]
    %v151 = vld [vmem:[#allocation7 + $0x70] sm:$0xff]
    %v152 = vld [vmem:[#allocation7 + $0x78] sm:$0xff]
    %v153 = vld [vmem:[#allocation7 + $0x80] sm:$0xff]
    %v154 = vld [vmem:[#allocation7 + $0x88] sm:$0xff]
    %v155 = vld [vmem:[#allocation7 + $0x90] sm:$0xff]
    %v156 = vld [vmem:[#allocation7 + $0x98] sm:$0xff]
    %v157 = vld [vmem:[#allocation7 + $0xa0] sm:$0xff]
    %v158 = vld [vmem:[#allocation7 + $0xa8] sm:$0xff]
    %v159 = vld [vmem:[#allocation7 + $0xb0] sm:$0xff]
    %v160 = vld [vmem:[#allocation7 + $0xb8] sm:$0xff]
    %v161 = vld [vmem:[#allocation7 + $0xc0] sm:$0xff]
    %v162 = vld [vmem:[#allocation7 + $0xc8] sm:$0xff]
    %v163 = vld [vmem:[#allocation7 + $0xd0] sm:$0xff]
    %v164 = vld [vmem:[#allocation7 + $0xd8] sm:$0xff]
    %v165 = vld [vmem:[#allocation7 + $0xe0] sm:$0xff]
    %v166 = vld [vmem:[#allocation7 + $0xe8] sm:$0xff]
    %v167 = vld [vmem:[#allocation7 + $0xf0] sm:$0xff]
    %v168 = vld [vmem:[#allocation7 + $0xf8] sm:$0xff]
    %v169 = vld [vmem:[#allocation7 + $0x100] sm:$0xff]
    %v170 = vld [vmem:[#allocation7 + $0x108] sm:$0xff]
    %v171 = vld [vmem:[#allocation7 + $0x110] sm:$0xff]
    %v172 = vld [vmem:[#allocation7 + $0x118] sm:$0xff]
    %v173 = vld [vmem:[#allocation7 + $0x120] sm:$0xff]
    %v174 = vld [vmem:[#allocation7 + $0x128] sm:$0xff]
    %v175 = vld [vmem:[#allocation7 + $0x130] sm:$0xff]
    %v176 = vld [vmem:[#allocation7 + $0x138] sm:$0xff]
    %v177 = vld [vmem:[#allocation7 + $0x140] sm:$0xff]
    %v178 = vld [vmem:[#allocation7 + $0x148] sm:$0xff]
    %v179 = vld [vmem:[#allocation7 + $0x150] sm:$0xff]
    %v180 = vld [vmem:[#allocation7 + $0x158] sm:$0xff]
    %v181 = vld [vmem:[#allocation7 + $0x160] sm:$0xff]
    %v182 = vld [vmem:[#allocation7 + $0x168] sm:$0xff]
    %v183 = vld [vmem:[#allocation7 + $0x170] sm:$0xff]
    %v184 = vld [vmem:[#allocation7 + $0x178] sm:$0xff]
    %v185 = vld [vmem:[#allocation7 + $0x180] sm:$0xff]
    %v186 = vld [vmem:[#allocation7 + $0x188] sm:$0xff]
    %v187 = vld [vmem:[#allocation7 + $0x190] sm:$0xff]
    %v188 = vld [vmem:[#allocation7 + $0x198] sm:$0xff]
    %v189 = vld [vmem:[#allocation7 + $0x1a0] sm:$0xff]
    %v190 = vld [vmem:[#allocation7 + $0x1a8] sm:$0xff]
    %v191 = vld [vmem:[#allocation7 + $0x1b0] sm:$0xff]
    %v192 = vld [vmem:[#allocation7 + $0x1b8] sm:$0xff]
    %v193 = vld [vmem:[#allocation7 + $0x1c0] sm:$0xff]
    %v194 = vld [vmem:[#allocation7 + $0x1c8] sm:$0xff]
    %v195 = vld [vmem:[#allocation7 + $0x1d0] sm:$0xff]
    %v196 = vld [vmem:[#allocation7 + $0x1d8] sm:$0xff]
    %v197 = vld [vmem:[#allocation8] sm:$0xff]
    %v198 = vld [vmem:[#allocation8 + $0x8] sm:$0xff]
    %v199 = vld [vmem:[#allocation8 + $0x10] sm:$0xff]
    %v200 = vld [vmem:[#allocation8 + $0x18] sm:$0xff]
    %v201 = vld [vmem:[#allocation8 + $0x20] sm:$0xff]
    %v202 = vld [vmem:[#allocation8 + $0x28] sm:$0xff]
    %v203 = vld [vmem:[#allocation8 + $0x30] sm:$0xff]
    %v204 = vld [vmem:[#allocation8 + $0x38] sm:$0xff]
    %v205 = vld [vmem:[#allocation8 + $0x40] sm:$0xff]
    %v206 = vld [vmem:[#allocation8 + $0x48] sm:$0xff]
    %v207 = vld [vmem:[#allocation8 + $0x50] sm:$0xff]
    %v208 = vld [vmem:[#allocation8 + $0x58] sm:$0xff]
    %v209 = vld [vmem:[#allocation8 + $0x60] sm:$0xff]
    %v210 = vld [vmem:[#allocation8 + $0x68] sm:$0xff]
    %v211 = vld [vmem:[#allocation8 + $0x70] sm:$0xff]
    %v212 = vld [vmem:[#allocation8 + $0x78] sm:$0xff]
    %v213 = vld [vmem:[#allocation8 + $0x80] sm:$0xff]
    %v214 = vld [vmem:[#allocation8 + $0x88] sm:$0xff]
    %v215 = vld [vmem:[#allocation8 + $0x90] sm:$0xff]
    %v216 = vld [vmem:[#allocation8 + $0x98] sm:$0xff]
    %v217 = vld [vmem:[#allocation8 + $0xa0] sm:$0xff]
    %v218 = vld [vmem:[#allocation8 + $0xa8] sm:$0xff]
    %v219 = vld [vmem:[#allocation8 + $0xb0] sm:$0xff]
    %v220 = vld [vmem:[#allocation8 + $0xb8] sm:$0xff]
    %v221 = vld [vmem:[#allocation8 + $0xc0] sm:$0xff]
    %v222 = vld [vmem:[#allocation8 + $0xc8] sm:$0xff]
    %v223 = vld [vmem:[#allocation8 + $0xd0] sm:$0xff]
    %v224 = vld [vmem:[#allocation8 + $0xd8] sm:$0xff]
    %v225 = vld [vmem:[#allocation8 + $0xe0] sm:$0xff]
    %v226 = vld [vmem:[#allocation8 + $0xe8] sm:$0xff]
    %v227 = vld [vmem:[#allocation8 + $0xf0] sm:$0xff]
    %v228 = vld [vmem:[#allocation8 + $0xf8] sm:$0xff]
    %v229 = vld [vmem:[#allocation8 + $0x100] sm:$0xff]
    %v230 = vld [vmem:[#allocation8 + $0x108] sm:$0xff]
    %v231 = vld [vmem:[#allocation8 + $0x110] sm:$0xff]
    %v232 = vld [vmem:[#allocation8 + $0x118] sm:$0xff]
    %v233 = vld [vmem:[#allocation8 + $0x120] sm:$0xff]
    %v234 = vld [vmem:[#allocation8 + $0x128] sm:$0xff]
    %v235 = vld [vmem:[#allocation8 + $0x130] sm:$0xff]
    %v236 = vld [vmem:[#allocation8 + $0x138] sm:$0xff]
    %v237 = vld [vmem:[#allocation8 + $0x140] sm:$0xff]
    %v238 = vld [vmem:[#allocation8 + $0x148] sm:$0xff]
    %v239 = vld [vmem:[#allocation8 + $0x150] sm:$0xff]
    %v240 = vld [vmem:[#allocation8 + $0x158] sm:$0xff]
    %v241 = vld [vmem:[#allocation8 + $0x160] sm:$0xff]
    %v242 = vld [vmem:[#allocation8 + $0x168] sm:$0xff]
    %v243 = vld [vmem:[#allocation8 + $0x170] sm:$0xff]
    %v244 = vld [vmem:[#allocation8 + $0x178] sm:$0xff]
    %v245 = vld [vmem:[#allocation8 + $0x180] sm:$0xff]
    %v246 = vld [vmem:[#allocation8 + $0x188] sm:$0xff]
    %v247 = vld [vmem:[#allocation8 + $0x190] sm:$0xff]
    %v248 = vld [vmem:[#allocation8 + $0x198] sm:$0xff]
    %v249 = vld [vmem:[#allocation8 + $0x1a0] sm:$0xff]
    %v250 = vld [vmem:[#allocation8 + $0x1a8] sm:$0xff]
    %v251 = vld [vmem:[#allocation8 + $0x1b0] sm:$0xff]
    %v252 = vld [vmem:[#allocation8 + $0x1b8] sm:$0xff]
    %v253 = vld [vmem:[#allocation8 + $0x1c0] sm:$0xff]
    %v254 = vld [vmem:[#allocation8 + $0x1c8] sm:$0xff]
    %v255 = vld [vmem:[#allocation8 + $0x1d0] sm:$0xff]
    %v256 = vld [vmem:[#allocation8 + $0x1d8] sm:$0xff]
    %v257 = vmax.f32 %v137, %v139
    %v258 = vmax.f32 %v138, %v140
    %v259 = vmax.f32 %v257, %v141
    %v260 = vmax.f32 %v258, %v142
    %v261 = vmax.f32 %v259, %v143
    %v262 = vmax.f32 %v260, %v144
    %v263 = vmax.f32 %v261, %v145
    %v264 = vmax.f32 %v262, %v146
    %v265 = vmax.f32 %v263, %v147
    %v266 = vmax.f32 %v264, %v148
    %v267 = vmax.f32 %v265, %v149
    %v268 = vmax.f32 %v266, %v150
    %v269 = vmax.f32 %v267, %v151
    %v270 = vmax.f32 %v268, %v152
    %v271 = vmax.f32 %v269, %v153
    %v272 = vmax.f32 %v270, %v154
    %v273 = vmax.f32 %v271, %v155
    %v274 = vmax.f32 %v272, %v156
    %v275 = vmax.f32 %v273, %v274
    %276 = vmax.xlane.f32.xlu0 %v275
    %v277 = vpop.xlane.xlu0 %276
    %v278 = vmax.f32 %v157, %v159
    %v279 = vmax.f32 %v158, %v160
    %v280 = vmax.f32 %v278, %v161
    %v281 = vmax.f32 %v279, %v162
    %v282 = vmax.f32 %v280, %v163
    %v283 = vmax.f32 %v281, %v164
    %v284 = vmax.f32 %v282, %v165
    %v285 = vmax.f32 %v283, %v166
    %v286 = vmax.f32 %v284, %v167
    %v287 = vmax.f32 %v285, %v168
    %v288 = vmax.f32 %v286, %v169
    %v289 = vmax.f32 %v287, %v170
    %v290 = vmax.f32 %v288, %v171
    %v291 = vmax.f32 %v289, %v172
    %v292 = vmax.f32 %v290, %v173
    %v293 = vmax.f32 %v291, %v174
    %v294 = vmax.f32 %v292, %v175
    %v295 = vmax.f32 %v293, %v176
    %v296 = vmax.f32 %v294, %v295
    %297 = vmax.xlane.f32.xlu0 %v296
    %v298 = vpop.xlane.xlu0 %297
    %v299 = vmax.f32 %v177, %v179
    %v300 = vmax.f32 %v178, %v180
    %v301 = vmax.f32 %v299, %v181
    %v302 = vmax.f32 %v300, %v182
    %v303 = vmax.f32 %v301, %v183
    %v304 = vmax.f32 %v302, %v184
    %v305 = vmax.f32 %v303, %v185
    %v306 = vmax.f32 %v304, %v186
    %v307 = vmax.f32 %v305, %v187
    %v308 = vmax.f32 %v306, %v188
    %v309 = vmax.f32 %v307, %v189
    %v310 = vmax.f32 %v308, %v190
    %v311 = vmax.f32 %v309, %v191
    %v312 = vmax.f32 %v310, %v192
    %v313 = vmax.f32 %v311, %v193
    %v314 = vmax.f32 %v312, %v194
    %v315 = vmax.f32 %v313, %v195
    %v316 = vmax.f32 %v314, %v196
    %v317 = vmax.f32 %v315, %v316
    %318 = vmax.xlane.f32.xlu0 %v317
    %v319 = vpop.xlane.xlu0 %318
    %v320 = vsub.f32 %v137, %v277
    %v321 = vsub.f32 %v138, %v277
    %v322 = vsub.f32 %v139, %v277
    %v323 = vsub.f32 %v140, %v277
    %v324 = vsub.f32 %v141, %v277
    %v325 = vsub.f32 %v142, %v277
    %v326 = vsub.f32 %v143, %v277
    %v327 = vsub.f32 %v144, %v277
    %v328 = vsub.f32 %v145, %v277
    %v329 = vsub.f32 %v146, %v277
    %v330 = vsub.f32 %v147, %v277
    %v331 = vsub.f32 %v148, %v277
    %v332 = vsub.f32 %v149, %v277
    %v333 = vsub.f32 %v150, %v277
    %v334 = vsub.f32 %v151, %v277
    %v335 = vsub.f32 %v152, %v277
    %v336 = vsub.f32 %v153, %v277
    %v337 = vsub.f32 %v154, %v277
    %v338 = vsub.f32 %v155, %v277
    %v339 = vsub.f32 %v156, %v277
    %v340 = vsub.f32 %v157, %v298
    %v341 = vsub.f32 %v158, %v298
    %v342 = vsub.f32 %v159, %v298
    %v343 = vsub.f32 %v160, %v298
    %v344 = vsub.f32 %v161, %v298
    %v345 = vsub.f32 %v162, %v298
    %v346 = vsub.f32 %v163, %v298
    %v347 = vsub.f32 %v164, %v298
    %v348 = vsub.f32 %v165, %v298
    %v349 = vsub.f32 %v166, %v298
    %v350 = vsub.f32 %v167, %v298
    %v351 = vsub.f32 %v168, %v298
    %v352 = vsub.f32 %v169, %v298
    %v353 = vsub.f32 %v170, %v298
    %v354 = vsub.f32 %v171, %v298
    %v355 = vsub.f32 %v172, %v298
    %v356 = vsub.f32 %v173, %v298
    %v357 = vsub.f32 %v174, %v298
    %v358 = vsub.f32 %v175, %v298
    %v359 = vsub.f32 %v176, %v298
    %v360 = vsub.f32 %v177, %v319
    %v361 = vsub.f32 %v178, %v319
    %v362 = vsub.f32 %v179, %v319
    %v363 = vsub.f32 %v180, %v319
    %v364 = vsub.f32 %v181, %v319
    %v365 = vsub.f32 %v182, %v319
    %v366 = vsub.f32 %v183, %v319
    %v367 = vsub.f32 %v184, %v319
    %v368 = vsub.f32 %v185, %v319
    %v369 = vsub.f32 %v186, %v319
    %v370 = vsub.f32 %v187, %v319
    %v371 = vsub.f32 %v188, %v319
    %v372 = vsub.f32 %v189, %v319
    %v373 = vsub.f32 %v190, %v319
    %v374 = vsub.f32 %v191, %v319
    %v375 = vsub.f32 %v192, %v319
    %v376 = vsub.f32 %v193, %v319
    %v377 = vsub.f32 %v194, %v319
    %v378 = vsub.f32 %v195, %v319
    %v379 = vsub.f32 %v196, %v319
    %v380 = vmul.f32 %v320, 1.442695
    %v381 = vpow.pop %v380
    %v382 = vmul.f32 %v321, 1.442695
    %v383 = vpow.pop %v382
    %v384 = vmul.f32 %v322, 1.442695
    %v385 = vpow.pop %v384
    %v386 = vmul.f32 %v323, 1.442695
    %v387 = vpow.pop %v386
    %v388 = vmul.f32 %v324, 1.442695
    %v389 = vpow.pop %v388
    %v390 = vmul.f32 %v325, 1.442695
    %v391 = vpow.pop %v390
    %v392 = vmul.f32 %v326, 1.442695
    %v393 = vpow.pop %v392
    %v394 = vmul.f32 %v327, 1.442695
    %v395 = vpow.pop %v394
    %v396 = vmul.f32 %v328, 1.442695
    %v397 = vpow.pop %v396
    %v398 = vmul.f32 %v329, 1.442695
    %v399 = vpow.pop %v398
    %v400 = vmul.f32 %v330, 1.442695
    %v401 = vpow.pop %v400
    %v402 = vmul.f32 %v331, 1.442695
    %v403 = vpow.pop %v402
    %v404 = vmul.f32 %v332, 1.442695
    %v405 = vpow.pop %v404
    %v406 = vmul.f32 %v333, 1.442695
    %v407 = vpow.pop %v406
    %v408 = vmul.f32 %v334, 1.442695
    %v409 = vpow.pop %v408
    %v410 = vmul.f32 %v335, 1.442695
    %v411 = vpow.pop %v410
    %v412 = vmul.f32 %v336, 1.442695
    %v413 = vpow.pop %v412
    %v414 = vmul.f32 %v337, 1.442695
    %v415 = vpow.pop %v414
    %v416 = vmul.f32 %v338, 1.442695
    %v417 = vpow.pop %v416
    %v418 = vmul.f32 %v339, 1.442695
    %v419 = vpow.pop %v418
    %v420 = vmul.f32 %v340, 1.442695
    %v421 = vpow.pop %v420
    %v422 = vmul.f32 %v341, 1.442695
    %v423 = vpow.pop %v422
    %v424 = vmul.f32 %v342, 1.442695
    %v425 = vpow.pop %v424
    %v426 = vmul.f32 %v343, 1.442695
    %v427 = vpow.pop %v426
    %v428 = vmul.f32 %v344, 1.442695
    %v429 = vpow.pop %v428
    %v430 = vmul.f32 %v345, 1.442695
    %v431 = vpow.pop %v430
    %v432 = vmul.f32 %v346, 1.442695
    %v433 = vpow.pop %v432
    %v434 = vmul.f32 %v347, 1.442695
    %v435 = vpow.pop %v434
    %v436 = vmul.f32 %v348, 1.442695
    %v437 = vpow.pop %v436
    %v438 = vmul.f32 %v349, 1.442695
    %v439 = vpow.pop %v438
    %v440 = vmul.f32 %v350, 1.442695
    %v441 = vpow.pop %v440
    %v442 = vmul.f32 %v351, 1.442695
    %v443 = vpow.pop %v442
    %v444 = vmul.f32 %v352, 1.442695
    %v445 = vpow.pop %v444
    %v446 = vmul.f32 %v353, 1.442695
    %v447 = vpow.pop %v446
    %v448 = vmul.f32 %v354, 1.442695
    %v449 = vpow.pop %v448
    %v450 = vmul.f32 %v355, 1.442695
    %v451 = vpow.pop %v450
    %v452 = vmul.f32 %v356, 1.442695
    %v453 = vpow.pop %v452
    %v454 = vmul.f32 %v357, 1.442695
    %v455 = vpow.pop %v454
    %v456 = vmul.f32 %v358, 1.442695
    %v457 = vpow.pop %v456
    %v458 = vmul.f32 %v359, 1.442695
    %v459 = vpow.pop %v458
    %v460 = vmul.f32 %v360, 1.442695
    %v461 = vpow.pop %v460
    %v462 = vmul.f32 %v361, 1.442695
    %v463 = vpow.pop %v462
    %v464 = vmul.f32 %v362, 1.442695
    %v465 = vpow.pop %v464
    %v466 = vmul.f32 %v363, 1.442695
    %v467 = vpow.pop %v466
    %v468 = vmul.f32 %v364, 1.442695
    %v469 = vpow.pop %v468
    %v470 = vmul.f32 %v365, 1.442695
    %v471 = vpow.pop %v470
    %v472 = vmul.f32 %v366, 1.442695
    %v473 = vpow.pop %v472
    %v474 = vmul.f32 %v367, 1.442695
    %v475 = vpow.pop %v474
    %v476 = vmul.f32 %v368, 1.442695
    %v477 = vpow.pop %v476
    %v478 = vmul.f32 %v369, 1.442695
    %v479 = vpow.pop %v478
    %v480 = vmul.f32 %v370, 1.442695
    %v481 = vpow.pop %v480
    %v482 = vmul.f32 %v371, 1.442695
    %v483 = vpow.pop %v482
    %v484 = vmul.f32 %v372, 1.442695
    %v485 = vpow.pop %v484
    %v486 = vmul.f32 %v373, 1.442695
    %v487 = vpow.pop %v486
    %v488 = vmul.f32 %v374, 1.442695
    %v489 = vpow.pop %v488
    %v490 = vmul.f32 %v375, 1.442695
    %v491 = vpow.pop %v490
    %v492 = vmul.f32 %v376, 1.442695
    %v493 = vpow.pop %v492
    %v494 = vmul.f32 %v377, 1.442695
    %v495 = vpow.pop %v494
    %v496 = vmul.f32 %v378, 1.442695
    %v497 = vpow.pop %v496
    %v498 = vmul.f32 %v379, 1.442695
    %v499 = vpow.pop %v498
    %v500 = vadd.f32 %v381, %v383
    %v501 = vadd.f32 %v500, %v385
    %v502 = vadd.f32 %v501, %v387
    %v503 = vadd.f32 %v502, %v389
    %v504 = vadd.f32 %v503, %v391
    %v505 = vadd.f32 %v504, %v393
    %v506 = vadd.f32 %v505, %v395
    %v507 = vadd.f32 %v506, %v397
    %v508 = vadd.f32 %v507, %v399
    %v509 = vadd.f32 %v508, %v401
    %v510 = vadd.f32 %v509, %v403
    %v511 = vadd.f32 %v510, %v405
    %v512 = vadd.f32 %v511, %v407
    %v513 = vadd.f32 %v512, %v409
    %v514 = vadd.f32 %v513, %v411
    %v515 = vadd.f32 %v514, %v413
    %v516 = vadd.f32 %v515, %v415
    %v517 = vadd.f32 %v516, %v417
    %v518 = vadd.f32 %v517, %v419
    %519 = vadd.xlane.f32.xlu0 %v518
    %v520 = vpop.xlane.xlu0 %519
    %v521 = vadd.f32 %v421, %v423
    %v522 = vadd.f32 %v521, %v425
    %v523 = vadd.f32 %v522, %v427
    %v524 = vadd.f32 %v523, %v429
    %v525 = vadd.f32 %v524, %v431
    %v526 = vadd.f32 %v525, %v433
    %v527 = vadd.f32 %v526, %v435
    %v528 = vadd.f32 %v527, %v437
    %v529 = vadd.f32 %v528, %v439
    %v530 = vadd.f32 %v529, %v441
    %v531 = vadd.f32 %v530, %v443
    %v532 = vadd.f32 %v531, %v445
    %v533 = vadd.f32 %v532, %v447
    %v534 = vadd.f32 %v533, %v449
    %v535 = vadd.f32 %v534, %v451
    %v536 = vadd.f32 %v535, %v453
    %v537 = vadd.f32 %v536, %v455
    %v538 = vadd.f32 %v537, %v457
    %v539 = vadd.f32 %v538, %v459
    %540 = vadd.xlane.f32.xlu0 %v539
    %v541 = vpop.xlane.xlu0 %540
    %v542 = vadd.f32 %v461, %v463
    %v543 = vadd.f32 %v542, %v465
    %v544 = vadd.f32 %v543, %v467
    %v545 = vadd.f32 %v544, %v469
    %v546 = vadd.f32 %v545, %v471
    %v547 = vadd.f32 %v546, %v473
    %v548 = vadd.f32 %v547, %v475
    %v549 = vadd.f32 %v548, %v477
    %v550 = vadd.f32 %v549, %v479
    %v551 = vadd.f32 %v550, %v481
    %v552 = vadd.f32 %v551, %v483
    %v553 = vadd.f32 %v552, %v485
    %v554 = vadd.f32 %v553, %v487
    %v555 = vadd.f32 %v554, %v489
    %v556 = vadd.f32 %v555, %v491
    %v557 = vadd.f32 %v556, %v493
    %v558 = vadd.f32 %v557, %v495
    %v559 = vadd.f32 %v558, %v497
    %v560 = vadd.f32 %v559, %v499
    %561 = vadd.xlane.f32.xlu0 %v560
    %v562 = vpop.xlane.xlu0 %561
    %v563 = vlog2.pop %v520
    %v564 = vmul.f32 %v563, 0.6931472
    %v565 = vlog2.pop %v541
    %v566 = vmul.f32 %v565, 0.6931472
    %v567 = vlog2.pop %v562
    %v568 = vmul.f32 %v567, 0.6931472
    %v569 = vadd.f32 %v277, %v564
    %v570 = vadd.f32 %v298, %v566
    %v571 = vadd.f32 %v319, %v568
    %v572 = vsub.f32 %v569, %v137
    %v573 = vsub.f32 %v569, %v138
    %v574 = vsub.f32 %v569, %v139
    %v575 = vsub.f32 %v569, %v140
    %v576 = vsub.f32 %v569, %v141
    %v577 = vsub.f32 %v569, %v142
    %v578 = vsub.f32 %v569, %v143
    %v579 = vsub.f32 %v569, %v144
    %v580 = vsub.f32 %v569, %v145
    %v581 = vsub.f32 %v569, %v146
    %v582 = vsub.f32 %v569, %v147
    %v583 = vsub.f32 %v569, %v148
    %v584 = vsub.f32 %v569, %v149
    %v585 = vsub.f32 %v569, %v150
    %v586 = vsub.f32 %v569, %v151
    %v587 = vsub.f32 %v569, %v152
    %v588 = vsub.f32 %v569, %v153
    %v589 = vsub.f32 %v569, %v154
    %v590 = vsub.f32 %v569, %v155
    %v591 = vsub.f32 %v569, %v156
    %v592 = vsub.f32 %v570, %v157
    %v593 = vsub.f32 %v570, %v158
    %v594 = vsub.f32 %v570, %v159
    %v595 = vsub.f32 %v570, %v160
    %v596 = vsub.f32 %v570, %v161
    %v597 = vsub.f32 %v570, %v162
    %v598 = vsub.f32 %v570, %v163
    %v599 = vsub.f32 %v570, %v164
    %v600 = vsub.f32 %v570, %v165
    %v601 = vsub.f32 %v570, %v166
    %v602 = vsub.f32 %v570, %v167
    %v603 = vsub.f32 %v570, %v168
    %v604 = vsub.f32 %v570, %v169
    %v605 = vsub.f32 %v570, %v170
    %v606 = vsub.f32 %v570, %v171
    %v607 = vsub.f32 %v570, %v172
    %v608 = vsub.f32 %v570, %v173
    %v609 = vsub.f32 %v570, %v174
    %v610 = vsub.f32 %v570, %v175
    %v611 = vsub.f32 %v570, %v176
    %v612 = vsub.f32 %v571, %v177
    %v613 = vsub.f32 %v571, %v178
    %v614 = vsub.f32 %v571, %v179
    %v615 = vsub.f32 %v571, %v180
    %v616 = vsub.f32 %v571, %v181
    %v617 = vsub.f32 %v571, %v182
    %v618 = vsub.f32 %v571, %v183
    %v619 = vsub.f32 %v571, %v184
    %v620 = vsub.f32 %v571, %v185
    %v621 = vsub.f32 %v571, %v186
    %v622 = vsub.f32 %v571, %v187
    %v623 = vsub.f32 %v571, %v188
    %v624 = vsub.f32 %v571, %v189
    %v625 = vsub.f32 %v571, %v190
    %v626 = vsub.f32 %v571, %v191
    %v627 = vsub.f32 %v571, %v192
    %v628 = vsub.f32 %v571, %v193
    %v629 = vsub.f32 %v571, %v194
    %v630 = vsub.f32 %v571, %v195
    %v631 = vsub.f32 %v571, %v196
    %v632 = vmul.f32 %v197, %v572
    %v633 = vmul.f32 %v198, %v573
    %v634 = vmul.f32 %v199, %v574
    %v635 = vmul.f32 %v200, %v575
    %v636 = vmul.f32 %v201, %v576
    %v637 = vmul.f32 %v202, %v577
    %v638 = vmul.f32 %v203, %v578
    %v639 = vmul.f32 %v204, %v579
    %v640 = vmul.f32 %v205, %v580
    %v641 = vmul.f32 %v206, %v581
    %v642 = vmul.f32 %v207, %v582
    %v643 = vmul.f32 %v208, %v583
    %v644 = vmul.f32 %v209, %v584
    %v645 = vmul.f32 %v210, %v585
    %v646 = vmul.f32 %v211, %v586
    %v647 = vmul.f32 %v212, %v587
    %v648 = vmul.f32 %v213, %v588
    %v649 = vmul.f32 %v214, %v589
    %v650 = vmul.f32 %v215, %v590
    %v651 = vmul.f32 %v216, %v591
    %v652 = vmul.f32 %v217, %v592
    %v653 = vmul.f32 %v218, %v593
    %v654 = vmul.f32 %v219, %v594
    %v655 = vmul.f32 %v220, %v595
    %v656 = vmul.f32 %v221, %v596
    %v657 = vmul.f32 %v222, %v597
    %v658 = vmul.f32 %v223, %v598
    %v659 = vmul.f32 %v224, %v599
    %v660 = vmul.f32 %v225, %v600
    %v661 = vmul.f32 %v226, %v601
    %v662 = vmul.f32 %v227, %v602
    %v663 = vmul.f32 %v228, %v603
    %v664 = vmul.f32 %v229, %v604
    %v665 = vmul.f32 %v230, %v605
    %v666 = vmul.f32 %v231, %v606
    %v667 = vmul.f32 %v232, %v607
    %v668 = vmul.f32 %v233, %v608
    %v669 = vmul.f32 %v234, %v609
    %v670 = vmul.f32 %v235, %v610
    %v671 = vmul.f32 %v236, %v611
    %v672 = vmul.f32 %v237, %v612
    %v673 = vmul.f32 %v238, %v613
    %v674 = vmul.f32 %v239, %v614
    %v675 = vmul.f32 %v240, %v615
    %v676 = vmul.f32 %v241, %v616
    %v677 = vmul.f32 %v242, %v617
    %v678 = vmul.f32 %v243, %v618
    %v679 = vmul.f32 %v244, %v619
    %v680 = vmul.f32 %v245, %v620
    %v681 = vmul.f32 %v246, %v621
    %v682 = vmul.f32 %v247, %v622
    %v683 = vmul.f32 %v248, %v623
    %v684 = vmul.f32 %v249, %v624
    %v685 = vmul.f32 %v250, %v625
    %v686 = vmul.f32 %v251, %v626
    %v687 = vmul.f32 %v252, %v627
    %v688 = vmul.f32 %v253, %v628
    %v689 = vmul.f32 %v254, %v629
    %v690 = vmul.f32 %v255, %v630
    %v691 = vmul.f32 %v256, %v631
    %v692 = vadd.f32 %v632, %v633
    %v693 = vadd.f32 %v692, %v634
    %v694 = vadd.f32 %v693, %v635
    %v695 = vadd.f32 %v694, %v636
    %v696 = vadd.f32 %v695, %v637
    %v697 = vadd.f32 %v696, %v638
    %v698 = vadd.f32 %v697, %v639
    %v699 = vadd.f32 %v698, %v640
    %v700 = vadd.f32 %v699, %v641
    %v701 = vadd.f32 %v700, %v642
    %v702 = vadd.f32 %v701, %v643
    %v703 = vadd.f32 %v702, %v644
    %v704 = vadd.f32 %v703, %v645
    %v705 = vadd.f32 %v704, %v646
    %v706 = vadd.f32 %v705, %v647
    %v707 = vadd.f32 %v706, %v648
    %v708 = vadd.f32 %v707, %v649
    %v709 = vadd.f32 %v708, %v650
    %v710 = vadd.f32 %v709, %v651
    %v711 = vadd.f32 %v710, %v652
    %v712 = vadd.f32 %v711, %v653
    %v713 = vadd.f32 %v712, %v654
    %v714 = vadd.f32 %v713, %v655
    %v715 = vadd.f32 %v714, %v656
    %v716 = vadd.f32 %v715, %v657
    %v717 = vadd.f32 %v716, %v658
    %v718 = vadd.f32 %v717, %v659
    %v719 = vadd.f32 %v718, %v660
    %v720 = vadd.f32 %v719, %v661
    %v721 = vadd.f32 %v720, %v662
    %v722 = vadd.f32 %v721, %v663
    %v723 = vadd.f32 %v722, %v664
    %v724 = vadd.f32 %v723, %v665
    %v725 = vadd.f32 %v724, %v666
    %v726 = vadd.f32 %v725, %v667
    %v727 = vadd.f32 %v726, %v668
    %v728 = vadd.f32 %v727, %v669
    %v729 = vadd.f32 %v728, %v670
    %v730 = vadd.f32 %v729, %v671
    %v731 = vadd.f32 %v730, %v672
    %v732 = vadd.f32 %v731, %v673
    %v733 = vadd.f32 %v732, %v674
    %v734 = vadd.f32 %v733, %v675
    %v735 = vadd.f32 %v734, %v676
    %v736 = vadd.f32 %v735, %v677
    %v737 = vadd.f32 %v736, %v678
    %v738 = vadd.f32 %v737, %v679
    %v739 = vadd.f32 %v738, %v680
    %v740 = vadd.f32 %v739, %v681
    %v741 = vadd.f32 %v740, %v682
    %v742 = vadd.f32 %v741, %v683
    %v743 = vadd.f32 %v742, %v684
    %v744 = vadd.f32 %v743, %v685
    %v745 = vadd.f32 %v744, %v686
    %v746 = vadd.f32 %v745, %v687
    %v747 = vadd.f32 %v746, %v688
    %v748 = vadd.f32 %v747, %v689
    %v749 = vadd.f32 %v748, %v690
    %v750 = vadd.f32 %v749, %v691
    %751 = vadd.xlane.f32.xlu0 %v750
    %v752 = vpop.xlane.xlu0 %751
    %v753 = vrot.slane %v752, 4
    %v754 = vadd.f32 %v752, %v753
    %v755 = vrot.slane %v754, 2
    %v756 = vadd.f32 %v754, %v755
    %v757 = vrot.slane %v756, 1
    %v758 = vadd.f32 %v756, %v757
    %s759 = vtos %v758
    %s760 = smul.f32 %s759, 1.6660002e-05
    %v761 = vld [vmem:[%s7] sm:$0xff]
    %v762 = vld [vmem:[%s7 + $0x8] sm:$0xff]
    %v763 = vld [vmem:[%s7 + $0x10] sm:$0xff]
    %v764 = vld [vmem:[%s7 + $0x18] sm:$0xff]
    %v765 = vld [vmem:[%s7 + $0x20] sm:$0xff]
    %v766 = vld [vmem:[%s7 + $0x28] sm:$0xff]
    %v767 = vld [vmem:[%s7 + $0x30] sm:$0xff]
    %v768 = vld [vmem:[%s7 + $0x38] sm:$0xff]
    %v769 = vld [vmem:[%s7 + $0x40] sm:$0xff]
    %v770 = vld [vmem:[%s7 + $0x48] sm:$0xff]
    %v771 = vld [vmem:[%s7 + $0x50] sm:$0xff]
    %v772 = vld [vmem:[%s7 + $0x58] sm:$0xff]
    %v773 = vld [vmem:[%s7 + $0x60] sm:$0xf]
    %v774 = vld [vmem:[%s6] sm:$0xff]
    %v775 = vld [vmem:[%s6 + $0x8] sm:$0xff]
    %v776 = vld [vmem:[%s6 + $0x10] sm:$0xff]
    %v777 = vld [vmem:[%s6 + $0x18] sm:$0xff]
    %v778 = vld [vmem:[%s6 + $0x20] sm:$0xff]
    %v779 = vld [vmem:[%s6 + $0x28] sm:$0xff]
    %v780 = vld [vmem:[%s6 + $0x30] sm:$0x3]
    %vm781 = vcmask 408576
    %v783 = vsel %vm781, %v761, 0
    %v786 = vsel %vm781, %v762, 0
    %v789 = vsel %vm781, %v763, 0
    %v792 = vsel %vm781, %v764, 0
    %v795 = vsel %vm781, %v765, 0
    %v798 = vsel %vm781, %v766, 0
    %v801 = vsel %vm781, %v767, 0
    %v804 = vsel %vm781, %v768, 0
    %v807 = vsel %vm781, %v769, 0
    %v810 = vsel %vm781, %v770, 0
    %v813 = vsel %vm781, %v771, 0
    %v816 = vsel %vm781, %v772, 0
    %v819 = vsel %vm781, %v773, 0
    %vm821 = vcmask 1041408
    %v823 = vsel %vm821, %v780, 0
    %825 = vmatprep.subr.mxu0 0.0
    %826 = vmatpush1.msra.mxu0 0.0
    %827 = vmatprep.subr.mxu0 0.0
    %828 = vmatpush1.msra.mxu0 0.0
    %829 = vmatprep.subr.mxu0 0.0
    %830 = vmatpush1.msra.mxu0 0.0
    %831 = vmatprep.subr.mxu0 0.0
    %832 = vmatpush1.msra.mxu0 0.0
    %833 = vmatprep.subr.mxu0 0.0
    %834 = vmatpush1.msra.mxu0 0.0
    %835 = vmatprep.subr.mxu0 0.0
    %836 = vmatpush1.msra.mxu0 0.0
    %837 = vmatprep.subr.mxu0 0.0
    %838 = vmatpush1.msra.mxu0 0.0
    %839 = vmatprep.subr.mxu0 0.0
    %840 = vmatpush1.msra.mxu0 0.0
    %841 = vmatprep.subr.mxu0 0.0
    %842 = vmatpush1.msra.mxu0 0.0
    %843 = vmatprep.subr.mxu0 0.0
    %844 = vmatpush1.msra.mxu0 %v823
    %845 = vmatprep.subr.mxu0 0.0
    %846 = vmatpush1.msra.mxu0 %v779
    %847 = vmatprep.subr.mxu0 0.0
    %848 = vmatpush1.msra.mxu0 %v778
    %849 = vmatprep.subr.mxu0 0.0
    %850 = vmatpush1.msra.mxu0 %v777
    %851 = vmatprep.subr.mxu0 0.0
    %852 = vmatpush1.msra.mxu0 %v776
    %853 = vmatprep.subr.mxu0 0.0
    %854 = vmatpush1.msra.mxu0 %v775
    %855 = vmatprep.subr.mxu0 0.0
    %856 = vmatpush1.msra.mxu0 %v774
    %857 = vmatprep.subr.mxu0 0.0
    %858 = vmatpush2.msra.mxu0 0.0
    %859 = vmatprep.subr.mxu0 0.0
    %860 = vmatpush2.msra.mxu0 0.0
    %861 = vmatprep.subr.mxu0 0.0
    %862 = vmatpush2.msra.mxu0 0.0
    %863 = vmatprep.subr.mxu0 0.0
    %864 = vmatpush2.msra.mxu0 0.0
    %865 = vmatprep.subr.mxu0 0.0
    %866 = vmatpush2.msra.mxu0 0.0
    %867 = vmatprep.subr.mxu0 0.0
    %868 = vmatpush2.msra.mxu0 0.0
    %869 = vmatprep.subr.mxu0 0.0
    %870 = vmatpush2.msra.mxu0 0.0
    %871 = vmatprep.subr.mxu0 0.0
    %872 = vmatpush2.msra.mxu0 0.0
    %873 = vmatprep.subr.mxu0 0.0
    %874 = vmatpush2.msra.mxu0 0.0
    %875 = vmatprep.subr.mxu0 0.0
    %876 = vmatpush2.msra.mxu0 0.0
    %877 = vmatprep.subr.mxu0 0.0
    %878 = vmatpush2.msra.mxu0 0.0
    %879 = vmatprep.subr.mxu0 0.0
    %880 = vmatpush2.msra.mxu0 0.0
    %881 = vmatprep.subr.mxu0 0.0
    %882 = vmatpush2.msra.mxu0 0.0
    %883 = vmatprep.subr.mxu0 0.0
    %884 = vmatpush2.msra.mxu0 0.0
    %885 = vmatprep.subr.mxu0 0.0
    %886 = vmatpush2.msra.mxu0 0.0
    %887 = vmatprep.subr.mxu0 0.0
    %888 = vmatpush2.msra.mxu0 0.0
    %889 = vmatprep.mubr.f32.mxu0 0.0
    %890 = vmatmul.mubr.f32.gmra.mxu0 %v783
    %v891 = vpop.f32.mrf.mxu0
    %v892 = vadd.f32 0.0, %v891
    %v893 = vpop.f32.mrf.mxu0
    %894 = vmatprep.mubr.f32.mxu0 0.0
    %895 = vmatmul.mubr.f32.gmra.mxu0 %v786
    %v896 = vpop.f32.mrf.mxu0
    %v897 = vadd.f32 0.0, %v896
    %v898 = vpop.f32.mrf.mxu0
    %899 = vmatprep.mubr.f32.mxu0 0.0
    %900 = vmatmul.mubr.f32.gmra.mxu0 %v789
    %v901 = vpop.f32.mrf.mxu0
    %v902 = vadd.f32 0.0, %v901
    %v903 = vpop.f32.mrf.mxu0
    %904 = vmatprep.mubr.f32.mxu0 0.0
    %905 = vmatmul.mubr.f32.gmra.mxu0 %v792
    %v906 = vpop.f32.mrf.mxu0
    %v907 = vadd.f32 0.0, %v906
    %v908 = vpop.f32.mrf.mxu0
    %909 = vmatprep.mubr.f32.mxu0 0.0
    %910 = vmatmul.mubr.f32.gmra.mxu0 %v795
    %v911 = vpop.f32.mrf.mxu0
    %v912 = vadd.f32 0.0, %v911
    %v913 = vpop.f32.mrf.mxu0
    %914 = vmatprep.mubr.f32.mxu0 0.0
    %915 = vmatmul.mubr.f32.gmra.mxu0 %v798
    %v916 = vpop.f32.mrf.mxu0
    %v917 = vadd.f32 0.0, %v916
    %v918 = vpop.f32.mrf.mxu0
    %919 = vmatprep.mubr.f32.mxu0 0.0
    %920 = vmatmul.mubr.f32.gmra.mxu0 %v801
    %v921 = vpop.f32.mrf.mxu0
    %v922 = vadd.f32 0.0, %v921
    %v923 = vpop.f32.mrf.mxu0
    %924 = vmatprep.mubr.f32.mxu0 0.0
    %925 = vmatmul.mubr.f32.gmra.mxu0 %v804
    %v926 = vpop.f32.mrf.mxu0
    %v927 = vadd.f32 0.0, %v926
    %v928 = vpop.f32.mrf.mxu0
    %929 = vmatprep.mubr.f32.mxu0 0.0
    %930 = vmatmul.mubr.f32.gmra.mxu0 %v807
    %v931 = vpop.f32.mrf.mxu0
    %v932 = vadd.f32 0.0, %v931
    %v933 = vpop.f32.mrf.mxu0
    %934 = vmatprep.mubr.f32.mxu0 0.0
    %935 = vmatmul.mubr.f32.gmra.mxu0 %v810
    %v936 = vpop.f32.mrf.mxu0
    %v937 = vadd.f32 0.0, %v936
    %v938 = vpop.f32.mrf.mxu0
    %939 = vmatprep.mubr.f32.mxu0 0.0
    %940 = vmatmul.mubr.f32.gmra.mxu0 %v813
    %v941 = vpop.f32.mrf.mxu0
    %v942 = vadd.f32 0.0, %v941
    %v943 = vpop.f32.mrf.mxu0
    %944 = vmatprep.mubr.f32.mxu0 0.0
    %945 = vmatmul.mubr.f32.gmra.mxu0 %v816
    %v946 = vpop.f32.mrf.mxu0
    %v947 = vadd.f32 0.0, %v946
    %v948 = vpop.f32.mrf.mxu0
    %949 = vmatprep.mubr.f32.mxu0 0.0
    %950 = vmatmul.mubr.f32.gmra.mxu0 %v819
    %v951 = vpop.f32.mrf.mxu0
    %v952 = vadd.f32 0.0, %v951
    %v953 = vpop.f32.mrf.mxu0
    %954 = vdwg.mxu0
    %v955 = vld [vmem:[#allocation11] sm:$0xff]
    %v956 = vld [vmem:[#allocation11 + $0x8] sm:$0xff]
    %v957 = vld [vmem:[#allocation11 + $0x10] sm:$0xff]
    %v958 = vld [vmem:[#allocation11 + $0x18] sm:$0xff]
    %v959 = vld [vmem:[#allocation11 + $0x20] sm:$0xff]
    %v960 = vld [vmem:[#allocation11 + $0x28] sm:$0xff]
    %v961 = vld [vmem:[#allocation11 + $0x30] sm:$0x3]
    %v963 = vsel %vm781, %v892, 0
    %v966 = vsel %vm781, %v897, 0
    %v969 = vsel %vm781, %v902, 0
    %v972 = vsel %vm781, %v907, 0
    %v975 = vsel %vm781, %v912, 0
    %v978 = vsel %vm781, %v917, 0
    %v981 = vsel %vm781, %v922, 0
    %v984 = vsel %vm781, %v927, 0
    %v987 = vsel %vm781, %v932, 0
    %v990 = vsel %vm781, %v937, 0
    %v993 = vsel %vm781, %v942, 0
    %v996 = vsel %vm781, %v947, 0
    %v999 = vsel %vm781, %v952, 0
    %v1002 = vsel %vm821, %v961, 0
    %1004 = vmatprep.subr.mxu0 0.0
    %1005 = vmatpush1.msra.mxu0 0.0
    %1006 = vmatprep.subr.mxu0 0.0
    %1007 = vmatpush1.msra.mxu0 0.0
    %1008 = vmatprep.subr.mxu0 0.0
    %1009 = vmatpush1.msra.mxu0 0.0
    %1010 = vmatprep.subr.mxu0 0.0
    %1011 = vmatpush1.msra.mxu0 0.0
    %1012 = vmatprep.subr.mxu0 0.0
    %1013 = vmatpush1.msra.mxu0 0.0
    %1014 = vmatprep.subr.mxu0 0.0
    %1015 = vmatpush1.msra.mxu0 0.0
    %1016 = vmatprep.subr.mxu0 0.0
    %1017 = vmatpush1.msra.mxu0 0.0
    %1018 = vmatprep.subr.mxu0 0.0
    %1019 = vmatpush1.msra.mxu0 0.0
    %1020 = vmatprep.subr.mxu0 0.0
    %1021 = vmatpush1.msra.mxu0 0.0
    %1022 = vmatprep.subr.mxu0 0.0
    %1023 = vmatpush1.msra.mxu0 %v1002
    %1024 = vmatprep.subr.mxu0 0.0
    %1025 = vmatpush1.msra.mxu0 %v960
    %1026 = vmatprep.subr.mxu0 0.0
    %1027 = vmatpush1.msra.mxu0 %v959
    %1028 = vmatprep.subr.mxu0 0.0
    %1029 = vmatpush1.msra.mxu0 %v958
    %1030 = vmatprep.subr.mxu0 0.0
    %1031 = vmatpush1.msra.mxu0 %v957
    %1032 = vmatprep.subr.mxu0 0.0
    %1033 = vmatpush1.msra.mxu0 %v956
    %1034 = vmatprep.subr.mxu0 0.0
    %1035 = vmatpush1.msra.mxu0 %v955
    %1036 = vmatprep.subr.mxu0 0.0
    %1037 = vmatpush2.msra.mxu0 0.0
    %1038 = vmatprep.subr.mxu0 0.0
    %1039 = vmatpush2.msra.mxu0 0.0
    %1040 = vmatprep.subr.mxu0 0.0
    %1041 = vmatpush2.msra.mxu0 0.0
    %1042 = vmatprep.subr.mxu0 0.0
    %1043 = vmatpush2.msra.mxu0 0.0
    %1044 = vmatprep.subr.mxu0 0.0
    %1045 = vmatpush2.msra.mxu0 0.0
    %1046 = vmatprep.subr.mxu0 0.0
    %1047 = vmatpush2.msra.mxu0 0.0
    %1048 = vmatprep.subr.mxu0 0.0
    %1049 = vmatpush2.msra.mxu0 0.0
    %1050 = vmatprep.subr.mxu0 0.0
    %1051 = vmatpush2.msra.mxu0 0.0
    %1052 = vmatprep.subr.mxu0 0.0
    %1053 = vmatpush2.msra.mxu0 0.0
    %1054 = vmatprep.subr.mxu0 0.0
    %1055 = vmatpush2.msra.mxu0 0.0
    %1056 = vmatprep.subr.mxu0 0.0
    %1057 = vmatpush2.msra.mxu0 0.0
    %1058 = vmatprep.subr.mxu0 0.0
    %1059 = vmatpush2.msra.mxu0 0.0
    %1060 = vmatprep.subr.mxu0 0.0
    %1061 = vmatpush2.msra.mxu0 0.0
    %1062 = vmatprep.subr.mxu0 0.0
    %1063 = vmatpush2.msra.mxu0 0.0
    %1064 = vmatprep.subr.mxu0 0.0
    %1065 = vmatpush2.msra.mxu0 0.0
    %1066 = vmatprep.subr.mxu0 0.0
    %1067 = vmatpush2.msra.mxu0 0.0
    %1068 = vmatprep.mubr.f32.mxu0 0.0
    %1069 = vmatmul.mubr.f32.gmra.mxu0 %v963
    %v1070 = vpop.f32.mrf.mxu0
    %v1071 = vadd.f32 0.0, %v1070
    %v1072 = vpop.f32.mrf.mxu0
    %1073 = vmatprep.mubr.f32.mxu0 0.0
    %1074 = vmatmul.mubr.f32.gmra.mxu0 %v966
    %v1075 = vpop.f32.mrf.mxu0
    %v1076 = vadd.f32 0.0, %v1075
    %v1077 = vpop.f32.mrf.mxu0
    %1078 = vmatprep.mubr.f32.mxu0 0.0
    %1079 = vmatmul.mubr.f32.gmra.mxu0 %v969
    %v1080 = vpop.f32.mrf.mxu0
    %v1081 = vadd.f32 0.0, %v1080
    %v1082 = vpop.f32.mrf.mxu0
    %1083 = vmatprep.mubr.f32.mxu0 0.0
    %1084 = vmatmul.mubr.f32.gmra.mxu0 %v972
    %v1085 = vpop.f32.mrf.mxu0
    %v1086 = vadd.f32 0.0, %v1085
    %v1087 = vpop.f32.mrf.mxu0
    %1088 = vmatprep.mubr.f32.mxu0 0.0
    %1089 = vmatmul.mubr.f32.gmra.mxu0 %v975
    %v1090 = vpop.f32.mrf.mxu0
    %v1091 = vadd.f32 0.0, %v1090
    %v1092 = vpop.f32.mrf.mxu0
    %1093 = vmatprep.mubr.f32.mxu0 0.0
    %1094 = vmatmul.mubr.f32.gmra.mxu0 %v978
    %v1095 = vpop.f32.mrf.mxu0
    %v1096 = vadd.f32 0.0, %v1095
    %v1097 = vpop.f32.mrf.mxu0
    %1098 = vmatprep.mubr.f32.mxu0 0.0
    %1099 = vmatmul.mubr.f32.gmra.mxu0 %v981
    %v1100 = vpop.f32.mrf.mxu0
    %v1101 = vadd.f32 0.0, %v1100
    %v1102 = vpop.f32.mrf.mxu0
    %1103 = vmatprep.mubr.f32.mxu0 0.0
    %1104 = vmatmul.mubr.f32.gmra.mxu0 %v984
    %v1105 = vpop.f32.mrf.mxu0
    %v1106 = vadd.f32 0.0, %v1105
    %v1107 = vpop.f32.mrf.mxu0
    %1108 = vmatprep.mubr.f32.mxu0 0.0
    %1109 = vmatmul.mubr.f32.gmra.mxu0 %v987
    %v1110 = vpop.f32.mrf.mxu0
    %v1111 = vadd.f32 0.0, %v1110
    %v1112 = vpop.f32.mrf.mxu0
    %1113 = vmatprep.mubr.f32.mxu0 0.0
    %1114 = vmatmul.mubr.f32.gmra.mxu0 %v990
    %v1115 = vpop.f32.mrf.mxu0
    %v1116 = vadd.f32 0.0, %v1115
    %v1117 = vpop.f32.mrf.mxu0
    %1118 = vmatprep.mubr.f32.mxu0 0.0
    %1119 = vmatmul.mubr.f32.gmra.mxu0 %v993
    %v1120 = vpop.f32.mrf.mxu0
    %v1121 = vadd.f32 0.0, %v1120
    %v1122 = vpop.f32.mrf.mxu0
    %1123 = vmatprep.mubr.f32.mxu0 0.0
    %1124 = vmatmul.mubr.f32.gmra.mxu0 %v996
    %v1125 = vpop.f32.mrf.mxu0
    %v1126 = vadd.f32 0.0, %v1125
    %v1127 = vpop.f32.mrf.mxu0
    %1128 = vmatprep.mubr.f32.mxu0 0.0
    %1129 = vmatmul.mubr.f32.gmra.mxu0 %v999
    %v1130 = vpop.f32.mrf.mxu0
    %v1131 = vadd.f32 0.0, %v1130
    %v1132 = vpop.f32.mrf.mxu0
    %1133 = vdwg.mxu0
    %v1134 = vld [vmem:[%s4] sm:$0xff]
    %v1135 = vld [vmem:[%s4 + $0x8] sm:$0xff]
    %v1136 = vld [vmem:[%s4 + $0x10] sm:$0xff]
    %v1137 = vld [vmem:[%s4 + $0x18] sm:$0xff]
    %v1138 = vld [vmem:[%s4 + $0x20] sm:$0xff]
    %v1139 = vld [vmem:[%s4 + $0x28] sm:$0xff]
    %v1140 = vld [vmem:[%s4 + $0x30] sm:$0xff]
    %v1141 = vld [vmem:[%s4 + $0x38] sm:$0xff]
    %v1142 = vld [vmem:[%s4 + $0x40] sm:$0xff]
    %v1143 = vld [vmem:[%s4 + $0x48] sm:$0xff]
    %v1144 = vld [vmem:[%s4 + $0x50] sm:$0xff]
    %v1145 = vld [vmem:[%s4 + $0x58] sm:$0xff]
    %v1146 = vld [vmem:[%s4 + $0x60] sm:$0xf]
    %v1147 = vld [vmem:[#allocation10] sm:$0xff]
    %v1148 = vld [vmem:[#allocation10 + $0x8] sm:$0xff]
    %v1149 = vld [vmem:[#allocation10 + $0x10] sm:$0xff]
    %v1150 = vld [vmem:[#allocation10 + $0x18] sm:$0xff]
    %v1151 = vld [vmem:[#allocation10 + $0x20] sm:$0xff]
    %v1152 = vld [vmem:[#allocation10 + $0x28] sm:$0xff]
    %v1153 = vld [vmem:[#allocation10 + $0x30] sm:$0xff]
    %v1154 = vld [vmem:[#allocation10 + $0x38] sm:$0xff]
    %v1155 = vld [vmem:[#allocation10 + $0x40] sm:$0xff]
    %v1156 = vld [vmem:[#allocation10 + $0x48] sm:$0xff]
    %v1157 = vld [vmem:[#allocation10 + $0x50] sm:$0xff]
    %v1158 = vld [vmem:[#allocation10 + $0x58] sm:$0xff]
    %v1159 = vld [vmem:[#allocation10 + $0x60] sm:$0xf]
    %v1160 = vmax.f32 %v1134, 0.0
    %v1161 = vmax.f32 %v1135, 0.0
    %v1162 = vmax.f32 %v1136, 0.0
    %v1163 = vmax.f32 %v1137, 0.0
    %v1164 = vmax.f32 %v1138, 0.0
    %v1165 = vmax.f32 %v1139, 0.0
    %v1166 = vmax.f32 %v1140, 0.0
    %v1167 = vmax.f32 %v1141, 0.0
    %v1168 = vmax.f32 %v1142, 0.0
    %v1169 = vmax.f32 %v1143, 0.0
    %v1170 = vmax.f32 %v1144, 0.0
    %v1171 = vmax.f32 %v1145, 0.0
    %v1172 = vmax.f32 %v1146, 0.0
    %v1173 = vmul.f32 %v1134, %v1147
    %v1174 = vmul.f32 %v1135, %v1148
    %v1175 = vmul.f32 %v1136, %v1149
    %v1176 = vmul.f32 %v1137, %v1150
    %v1177 = vmul.f32 %v1138, %v1151
    %v1178 = vmul.f32 %v1139, %v1152
    %v1179 = vmul.f32 %v1140, %v1153
    %v1180 = vmul.f32 %v1141, %v1154
    %v1181 = vmul.f32 %v1142, %v1155
    %v1182 = vmul.f32 %v1143, %v1156
    %v1183 = vmul.f32 %v1144, %v1157
    %v1184 = vmul.f32 %v1145, %v1158
    %v1185 = vmul.f32 %v1146, %v1159
    %v1186 = vsub.f32 %v1160, %v1173
    %v1187 = vsub.f32 %v1161, %v1174
    %v1188 = vsub.f32 %v1162, %v1175
    %v1189 = vsub.f32 %v1163, %v1176
    %v1190 = vsub.f32 %v1164, %v1177
    %v1191 = vsub.f32 %v1165, %v1178
    %v1192 = vsub.f32 %v1166, %v1179
    %v1193 = vsub.f32 %v1167, %v1180
    %v1194 = vsub.f32 %v1168, %v1181
    %v1195 = vsub.f32 %v1169, %v1182
    %v1196 = vsub.f32 %v1170, %v1183
    %v1197 = vsub.f32 %v1171, %v1184
    %v1198 = vsub.f32 %v1172, %v1185
    %v1199 = vand.u32 2147483647, %v1134
    %v1200 = vand.u32 2147483647, %v1135
    %v1201 = vand.u32 2147483647, %v1136
    %v1202 = vand.u32 2147483647, %v1137
    %v1203 = vand.u32 2147483647, %v1138
    %v1204 = vand.u32 2147483647, %v1139
    %v1205 = vand.u32 2147483647, %v1140
    %v1206 = vand.u32 2147483647, %v1141
    %v1207 = vand.u32 2147483647, %v1142
    %v1208 = vand.u32 2147483647, %v1143
    %v1209 = vand.u32 2147483647, %v1144
    %v1210 = vand.u32 2147483647, %v1145
    %v1211 = vand.u32 2147483647, %v1146
    %v1212 = vsub.f32 0.0, %v1199
    %v1213 = vsub.f32 0.0, %v1200
    %v1214 = vsub.f32 0.0, %v1201
    %v1215 = vsub.f32 0.0, %v1202
    %v1216 = vsub.f32 0.0, %v1203
    %v1217 = vsub.f32 0.0, %v1204
    %v1218 = vsub.f32 0.0, %v1205
    %v1219 = vsub.f32 0.0, %v1206
    %v1220 = vsub.f32 0.0, %v1207
    %v1221 = vsub.f32 0.0, %v1208
    %v1222 = vsub.f32 0.0, %v1209
    %v1223 = vsub.f32 0.0, %v1210
    %v1224 = vsub.f32 0.0, %v1211
    %v1225 = vmul.f32 %v1212, 1.442695
    %v1226 = vpow.pop %v1225
    %v1227 = vmul.f32 %v1213, 1.442695
    %v1228 = vpow.pop %v1227
    %v1229 = vmul.f32 %v1214, 1.442695
    %v1230 = vpow.pop %v1229
    %v1231 = vmul.f32 %v1215, 1.442695
    %v1232 = vpow.pop %v1231
    %v1233 = vmul.f32 %v1216, 1.442695
    %v1234 = vpow.pop %v1233
    %v1235 = vmul.f32 %v1217, 1.442695
    %v1236 = vpow.pop %v1235
    %v1237 = vmul.f32 %v1218, 1.442695
    %v1238 = vpow.pop %v1237
    %v1239 = vmul.f32 %v1219, 1.442695
    %v1240 = vpow.pop %v1239
    %v1241 = vmul.f32 %v1220, 1.442695
    %v1242 = vpow.pop %v1241
    %v1243 = vmul.f32 %v1221, 1.442695
    %v1244 = vpow.pop %v1243
    %v1245 = vmul.f32 %v1222, 1.442695
    %v1246 = vpow.pop %v1245
    %v1247 = vmul.f32 %v1223, 1.442695
    %v1248 = vpow.pop %v1247
    %v1249 = vmul.f32 %v1224, 1.442695
    %v1250 = vpow.pop %v1249
    %v1251 = vadd.f32 %v1226, 1.0
    %v1252 = vadd.f32 %v1228, 1.0
    %v1253 = vadd.f32 %v1230, 1.0
    %v1254 = vadd.f32 %v1232, 1.0
    %v1255 = vadd.f32 %v1234, 1.0
    %v1256 = vadd.f32 %v1236, 1.0
    %v1257 = vadd.f32 %v1238, 1.0
    %v1258 = vadd.f32 %v1240, 1.0
    %v1259 = vadd.f32 %v1242, 1.0
    %v1260 = vadd.f32 %v1244, 1.0
    %v1261 = vadd.f32 %v1246, 1.0
    %v1262 = vadd.f32 %v1248, 1.0
    %v1263 = vadd.f32 %v1250, 1.0
    %v1264 = vlog2.pop %v1251
    %v1265 = vmul.f32 %v1264, 0.6931472
    %v1266 = vlog2.pop %v1252
    %v1267 = vmul.f32 %v1266, 0.6931472
    %v1268 = vlog2.pop %v1253
    %v1269 = vmul.f32 %v1268, 0.6931472
    %v1270 = vlog2.pop %v1254
    %v1271 = vmul.f32 %v1270, 0.6931472
    %v1272 = vlog2.pop %v1255
    %v1273 = vmul.f32 %v1272, 0.6931472
    %v1274 = vlog2.pop %v1256
    %v1275 = vmul.f32 %v1274, 0.6931472
    %v1276 = vlog2.pop %v1257
    %v1277 = vmul.f32 %v1276, 0.6931472
    %v1278 = vlog2.pop %v1258
    %v1279 = vmul.f32 %v1278, 0.6931472
    %v1280 = vlog2.pop %v1259
    %v1281 = vmul.f32 %v1280, 0.6931472
    %v1282 = vlog2.pop %v1260
    %v1283 = vmul.f32 %v1282, 0.6931472
    %v1284 = vlog2.pop %v1261
    %v1285 = vmul.f32 %v1284, 0.6931472
    %v1286 = vlog2.pop %v1262
    %v1287 = vmul.f32 %v1286, 0.6931472
    %v1288 = vlog2.pop %v1263
    %v1289 = vmul.f32 %v1288, 0.6931472
    %v1290 = vadd.f32 %v1186, %v1265
    %v1291 = vadd.f32 %v1187, %v1267
    %v1292 = vadd.f32 %v1188, %v1269
    %v1293 = vadd.f32 %v1189, %v1271
    %v1294 = vadd.f32 %v1190, %v1273
    %v1295 = vadd.f32 %v1191, %v1275
    %v1296 = vadd.f32 %v1192, %v1277
    %v1297 = vadd.f32 %v1193, %v1279
    %v1298 = vadd.f32 %v1194, %v1281
    %v1299 = vadd.f32 %v1195, %v1283
    %v1300 = vadd.f32 %v1196, %v1285
    %v1301 = vadd.f32 %v1197, %v1287
    %v1302 = vadd.f32 %v1198, %v1289
    %v1303 = vsub.f32 0.0, %v1290
    %v1304 = vsub.f32 0.0, %v1291
    %v1305 = vsub.f32 0.0, %v1292
    %v1306 = vsub.f32 0.0, %v1293
    %v1307 = vsub.f32 0.0, %v1294
    %v1308 = vsub.f32 0.0, %v1295
    %v1309 = vsub.f32 0.0, %v1296
    %v1310 = vsub.f32 0.0, %v1297
    %v1311 = vsub.f32 0.0, %v1298
    %v1312 = vsub.f32 0.0, %v1299
    %v1313 = vsub.f32 0.0, %v1300
    %v1314 = vsub.f32 0.0, %v1301
    %v1315 = vsub.f32 0.0, %v1302
    %v1316 = vmul.f32 %v1303, 1.442695
    %v1317 = vpow.pop %v1316
    %v1318 = vmul.f32 %v1304, 1.442695
    %v1319 = vpow.pop %v1318
    %v1320 = vmul.f32 %v1305, 1.442695
    %v1321 = vpow.pop %v1320
    %v1322 = vmul.f32 %v1306, 1.442695
    %v1323 = vpow.pop %v1322
    %v1324 = vmul.f32 %v1307, 1.442695
    %v1325 = vpow.pop %v1324
    %v1326 = vmul.f32 %v1308, 1.442695
    %v1327 = vpow.pop %v1326
    %v1328 = vmul.f32 %v1309, 1.442695
    %v1329 = vpow.pop %v1328
    %v1330 = vmul.f32 %v1310, 1.442695
    %v1331 = vpow.pop %v1330
    %v1332 = vmul.f32 %v1311, 1.442695
    %v1333 = vpow.pop %v1332
    %v1334 = vmul.f32 %v1312, 1.442695
    %v1335 = vpow.pop %v1334
    %v1336 = vmul.f32 %v1313, 1.442695
    %v1337 = vpow.pop %v1336
    %v1338 = vmul.f32 %v1314, 1.442695
    %v1339 = vpow.pop %v1338
    %v1340 = vmul.f32 %v1315, 1.442695
    %v1341 = vpow.pop %v1340
    %v1342 = vsub.f32 1.0, %v1317
    %v1343 = vsub.f32 1.0, %v1319
    %v1344 = vsub.f32 1.0, %v1321
    %v1345 = vsub.f32 1.0, %v1323
    %v1346 = vsub.f32 1.0, %v1325
    %v1347 = vsub.f32 1.0, %v1327
    %v1348 = vsub.f32 1.0, %v1329
    %v1349 = vsub.f32 1.0, %v1331
    %v1350 = vsub.f32 1.0, %v1333
    %v1351 = vsub.f32 1.0, %v1335
    %v1352 = vsub.f32 1.0, %v1337
    %v1353 = vsub.f32 1.0, %v1339
    %v1354 = vsub.f32 1.0, %v1341
    %v1355 = vmul.f32 %v1342, 0.5
    %v1356 = vmul.f32 %v1343, 0.5
    %v1357 = vmul.f32 %v1344, 0.5
    %v1358 = vmul.f32 %v1345, 0.5
    %v1359 = vmul.f32 %v1346, 0.5
    %v1360 = vmul.f32 %v1347, 0.5
    %v1361 = vmul.f32 %v1348, 0.5
    %v1362 = vmul.f32 %v1349, 0.5
    %v1363 = vmul.f32 %v1350, 0.5
    %v1364 = vmul.f32 %v1351, 0.5
    %v1365 = vmul.f32 %v1352, 0.5
    %v1366 = vmul.f32 %v1353, 0.5
    %v1367 = vmul.f32 %v1354, 0.5
    %v1368 = vmul.f32 %v1355, %v1342
    %v1369 = vmul.f32 %v1356, %v1343
    %v1370 = vmul.f32 %v1357, %v1344
    %v1371 = vmul.f32 %v1358, %v1345
    %v1372 = vmul.f32 %v1359, %v1346
    %v1373 = vmul.f32 %v1360, %v1347
    %v1374 = vmul.f32 %v1361, %v1348
    %v1375 = vmul.f32 %v1362, %v1349
    %v1376 = vmul.f32 %v1363, %v1350
    %v1377 = vmul.f32 %v1364, %v1351
    %v1378 = vmul.f32 %v1365, %v1352
    %v1379 = vmul.f32 %v1366, %v1353
    %v1380 = vmul.f32 %v1367, %v1354
    %v1381 = vmul.f32 %v1368, %v1290
    %v1382 = vmul.f32 %v1369, %v1291
    %v1383 = vmul.f32 %v1370, %v1292
    %v1384 = vmul.f32 %v1371, %v1293
    %v1385 = vmul.f32 %v1372, %v1294
    %v1386 = vmul.f32 %v1373, %v1295
    %v1387 = vmul.f32 %v1374, %v1296
    %v1388 = vmul.f32 %v1375, %v1297
    %v1389 = vmul.f32 %v1376, %v1298
    %v1390 = vmul.f32 %v1377, %v1299
    %v1391 = vmul.f32 %v1378, %v1300
    %v1392 = vmul.f32 %v1379, %v1301
    %v1393 = vmul.f32 %v1380, %v1302
    %vm1394 = vcmask 818176
    %v1395 = vsel %vm1394, %v1071, 0.0
    %v1396 = vsel %vm1394, %v1076, 0.0
    %v1397 = vadd.f32 %v1395, %v1396
    %v1398 = vsel %vm1394, %v1081, 0.0
    %v1399 = vadd.f32 %v1397, %v1398
    %v1400 = vsel %vm1394, %v1086, 0.0
    %v1401 = vadd.f32 %v1399, %v1400
    %v1402 = vsel %vm1394, %v1091, 0.0
    %v1403 = vadd.f32 %v1401, %v1402
    %v1404 = vsel %vm1394, %v1096, 0.0
    %v1405 = vadd.f32 %v1403, %v1404
    %v1406 = vsel %vm1394, %v1101, 0.0
    %v1407 = vadd.f32 %v1405, %v1406
    %v1408 = vsel %vm1394, %v1106, 0.0
    %v1409 = vadd.f32 %v1407, %v1408
    %v1410 = vsel %vm1394, %v1111, 0.0
    %v1411 = vadd.f32 %v1409, %v1410
    %v1412 = vsel %vm1394, %v1116, 0.0
    %v1413 = vadd.f32 %v1411, %v1412
    %v1414 = vsel %vm1394, %v1121, 0.0
    %v1415 = vadd.f32 %v1413, %v1414
    %v1416 = vsel %vm1394, %v1126, 0.0
    %v1417 = vadd.f32 %v1415, %v1416
    %vm1418 = vcmask 814080
    %v1419 = vsel %vm1418, %v1131, 0.0
    %v1420 = vadd.f32 %v1417, %v1419
    %v1421 = vrot.slane %v1420, 4
    %v1422 = vadd.f32 %v1420, %v1421
    %v1423 = vrot.slane %v1422, 2
    %v1424 = vadd.f32 %v1422, %v1423
    %v1425 = vrot.slane %v1424, 1
    %v1426 = vadd.f32 %v1424, %v1425
    %v1427 = vrcp.pop 100.0
    %v1428 = vmul.f32 %v1426, %v1427
    %v1429 = vmul.f32 %v1381, %v1428
    %v1430 = vmul.f32 %v1382, %v1428
    %v1431 = vmul.f32 %v1383, %v1428
    %v1432 = vmul.f32 %v1384, %v1428
    %v1433 = vmul.f32 %v1385, %v1428
    %v1434 = vmul.f32 %v1386, %v1428
    %v1435 = vmul.f32 %v1387, %v1428
    %v1436 = vmul.f32 %v1388, %v1428
    %v1437 = vmul.f32 %v1389, %v1428
    %v1438 = vmul.f32 %v1390, %v1428
    %v1439 = vmul.f32 %v1391, %v1428
    %v1440 = vmul.f32 %v1392, %v1428
    %v1441 = vmul.f32 %v1393, %v1428
    %v1442 = vsel %vm1394, %v1429, 0.0
    %v1443 = vsel %vm1394, %v1430, 0.0
    %v1444 = vadd.f32 %v1442, %v1443
    %v1445 = vsel %vm1394, %v1431, 0.0
    %v1446 = vadd.f32 %v1444, %v1445
    %v1447 = vsel %vm1394, %v1432, 0.0
    %v1448 = vadd.f32 %v1446, %v1447
    %v1449 = vsel %vm1394, %v1433, 0.0
    %v1450 = vadd.f32 %v1448, %v1449
    %v1451 = vsel %vm1394, %v1434, 0.0
    %v1452 = vadd.f32 %v1450, %v1451
    %v1453 = vsel %vm1394, %v1435, 0.0
    %v1454 = vadd.f32 %v1452, %v1453
    %v1455 = vsel %vm1394, %v1436, 0.0
    %v1456 = vadd.f32 %v1454, %v1455
    %v1457 = vsel %vm1394, %v1437, 0.0
    %v1458 = vadd.f32 %v1456, %v1457
    %v1459 = vsel %vm1394, %v1438, 0.0
    %v1460 = vadd.f32 %v1458, %v1459
    %v1461 = vsel %vm1394, %v1439, 0.0
    %v1462 = vadd.f32 %v1460, %v1461
    %v1463 = vsel %vm1394, %v1440, 0.0
    %v1464 = vadd.f32 %v1462, %v1463
    %v1465 = vsel %vm1418, %v1441, 0.0
    %v1466 = vadd.f32 %v1464, %v1465
    %1467 = vadd.xlane.f32.xlu0 %v1466
    %v1468 = vpop.xlane.xlu0 %1467
    %v1469 = vrot.slane %v1468, 4
    %v1470 = vadd.f32 %v1468, %v1469
    %v1471 = vrot.slane %v1470, 2
    %v1472 = vadd.f32 %v1470, %v1471
    %v1473 = vrot.slane %v1472, 1
    %v1474 = vadd.f32 %v1472, %v1473
    %s1475 = vtos %v1474
    %v1476 = vrcp.pop 10000.0
    %s1477 = vtos %v1476
    %s1478 = smul.f32 %s1475, %s1477
    %v1479 = vlaneseq
    %v1480 = vand.u32 %v1479, 127
    %vm1481 = vcmp.eq.s32.totalorder %v1480, 0
    %v1482 = vstv %s136
    %v1483 = vsel %vm1481, %v1482, 0.0
    %vm1484 = vcmp.eq.s32.totalorder %v1480, 1
    %v1485 = vstv %s760
    %v1486 = vsel %vm1484, %v1485, 0.0
    %v1487 = vadd.f32 %v1483, %v1486
    %vm1488 = vcmp.eq.s32.totalorder %v1480, 2
    %v1489 = vstv %s1478
    %v1490 = vsel %vm1488, %v1489, 0.0
    %v1491 = vadd.f32 %v1487, %v1490
    %1492 = vst [vmem:[#allocation13] sm:$0x1] %v1491
    // Predicated region
    $region62: #{tpu_custom_call.1} parent=1 // pred_check
      _
    $region63: #{tpu_custom_call.1} parent=1 // pred_check_branch
      %1494 = sbr.rel (0) target = $region65
    $region64: #{tpu_custom_call.1} parent=1 // pred_region
      %s1496 = ssub.s32 16, 16
      %1497 = vsyncadd [#allocation4], %s1496
      %s1499 = sshll.u32 [#allocation13], 4
      %s1500 = int_to_ptr.vmem [resolvable:$true] %s1499
      %1502 = dma.vmem_to_hbm [thread:$0]  %s1500, 16, %s9, [#allocation4]
    $region65: #{tpu_custom_call.1} parent=1 // pred_fallthru
      _
    // Predicated region
    $region66: #{tpu_custom_call.1} parent=1 // pred_check
      _
    $region67: #{tpu_custom_call.1} parent=1 // pred_check_branch
      %1504 = sbr.rel (0) target = $region69
    $region68: #{tpu_custom_call.1} parent=1 // pred_region
      %1505 = dma.done [#allocation4], 16
    $region69: #{tpu_custom_call.1} parent=1 // pred_fallthru
      _
    %1506 = vsyncpa [#allocation3], 1
    %1507 = vsyncpa [#allocation6], 1
    %1508 = vsyncpa [#allocation9], 1
    %1509 = vsyncpa [#allocation12], 1
    %1510 = vsyncpa [#allocation4], 1

</llo_original>
